<compile_context>
chip_gen: v5e
topology: v5e:2x2
jax: 0.10.0
libtpu: 0.0.40
codegen_flags: <defaults>
</compile_context>

<pallas_src>
import math
from functools import partial

import jax
import jax.numpy as jnp
from jax.experimental import pallas as pl
from jax.experimental.pallas import tpu as pltpu


# ----------------------------------------------------------------------------
# Fused AttentionLayer kernel
# ----------------------------------------------------------------------------
def _fused_attention_kernel(
    q_in_ref, k_in_ref, v_in_ref,
    wq_ref, bq_ref, wk_ref, bk_ref, wv_ref, bv_ref, wo_ref, bo_ref,
    out_ref, attn_ref,
    kT_scratch, v_scratch, ctx_scratch,
    *, n_heads, d_keys, d_values, scale, compute_dtype,
):
    # Blocks seen by the kernel:
    #   q_in:  (1, TQ, d_model)   k_in/v_in: (1, S, d_model)
    #   wq/wk: (d_model, H*E)     wv: (d_model, H*D)   wo: (H*D, d_out)
    #   bq/bk: (1, H*E)           bv: (1, H*D)         bo: (1, d_out)
    #   out:   (1, TQ, d_out)     attn: (1, H, TQ, S)
    #   kT_scratch: (H*E, S)      v_scratch: (S, H*D)  ctx_scratch: (TQ, H*D)
    H, E, D = n_heads, d_keys, d_values
    qi = pl.program_id(1)

    # --- K/V projections: once per batch row. -------------------------------
    # NOTE/invariant: this cache is only valid because (a) scratch persists
    # across grid steps, (b) the qi axis is the innermost, sequentially
    # iterated ("arbitrary") axis, and (c) every batch row starts at qi == 0.
    # Do NOT mark the qi axis "parallel" or reorder the grid.
    @pl.when(qi == 0)
    def _project_kv():
        x_k = k_in_ref[0].astype(compute_dtype)                  # (S, d_model)
        x_v = v_in_ref[0].astype(compute_dtype)
        # One lane-dense matmul per projection, all heads at once.
        k_all = (jnp.dot(x_k, wk_ref[...], preferred_element_type=jnp.float32)
                 + bk_ref[...])                                   # (S, H*E)
        v_all = (jnp.dot(x_v, wv_ref[...], preferred_element_type=jnp.float32)
                 + bv_ref[...])                                   # (S, H*D)
        # Pre-transpose K once so Q K^T is a plain (TQ,E)@(E,S) matmul later.
        kT_scratch[...] = k_all.T.astype(kT_scratch.dtype)        # (H*E, S)
        v_scratch[...] = v_all.astype(v_scratch.dtype)            # (S, H*D)

    # --- Q projection for this query tile: one matmul across all heads. -----
    x_q = q_in_ref[0].astype(compute_dtype)                       # (TQ, d_model)
    # Fold 1/sqrt(E) into q (TQ*H*E multiplies instead of H*TQ*S).
    q_all = (jnp.dot(x_q, wq_ref[...], preferred_element_type=jnp.float32)
             + bq_ref[...]) * scale                                # (TQ, H*E)

    # --- Per-head attention; contexts gathered for one fused projection. ----
    for h in range(H):
        q_h = q_all[:, h * E:(h + 1) * E].astype(compute_dtype)   # (TQ, E)
        kT_h = kT_scratch[pl.ds(h * E, E), :]                     # (E, S)
        v_h = v_scratch[:, pl.ds(h * D, D)]                       # (S, D)

        s = jnp.dot(q_h, kT_h, preferred_element_type=jnp.float32)  # (TQ, S)

        # Numerically-stable softmax in f32 (matches the PyTorch module).
        m = jnp.max(s, axis=-1, keepdims=True)
        p = jnp.exp(s - m)
        denom = jnp.sum(p, axis=-1, keepdims=True)
        # approx=False keeps exact attention probabilities (module semantics).
        a = p * pl.reciprocal(denom, approx=False)                 # (TQ, S)

        attn_ref[0, h] = a.astype(attn_ref.dtype)

        ctx = jnp.dot(a.astype(compute_dtype), v_h,
                      preferred_element_type=jnp.float32)          # (TQ, D)
        ctx_scratch[:, pl.ds(h * D, D)] = ctx

    # --- Fused output projection: one (TQ, H*D) @ (H*D, d_out) matmul. ------
    out = (jnp.dot(ctx_scratch[...].astype(compute_dtype), wo_ref[...],
                   preferred_element_type=jnp.float32)
           + bo_ref[...])                                          # (TQ, d_out)
    out_ref[0] = out.astype(out_ref.dtype)


def _padded_bytes(shape, itemsize):
    """Bytes of a buffer with its last two dims padded to (8, 128)."""
    shape = tuple(shape)
    if len(shape) == 1:
        shape = (1,) + shape
    lead, (r, c) = shape[:-2], shape[-2:]
    r = -(-r // 8) * 8
    c = -(-c // 128) * 128
    n = r * c
    for d in lead:
        n *= d
    return itemsize * n


def attention_layer_forward(params, queries, keys, values, attn_mask=None,
                            n_heads=4, mix=False,
                            compute_dtype=jnp.float32,
                            attn_dtype=jnp.float32):
    if attn_mask is not None:
        # TODO(synk): attn_mask handling is not implemented.
        raise NotImplementedError("attn_mask is not supported")
    if mix:
        # TODO(synk): mix=True path not implemented (module default mix=False).
        raise NotImplementedError("mix=True is not supported")

    B, L, d_model = queries.shape
    _, S, _ = keys.shape
    H = n_heads
    HE = params["wq"].shape[1]
    HD = params["wv"].shape[1]
    E = HE // H
    D = HD // H
    d_out = params["wo"].shape[1]
    scale = 1.0 / math.sqrt(E)

    cbytes = jnp.dtype(compute_dtype).itemsize
    abytes = jnp.dtype(attn_dtype).itemsize
    xbytes = jnp.dtype(queries.dtype).itemsize

    # Weights go in as plain 2-D matrices (head-batched matmuls in-kernel);
    # cast to the MXU operand dtype once, on the host side.
    wq = params["wq"].astype(compute_dtype)          # (d_model, H*E)
    wk = params["wk"].astype(compute_dtype)          # (d_model, H*E)
    wv = params["wv"].astype(compute_dtype)          # (d_model, H*D)
    wo = params["wo"].astype(compute_dtype)          # (H*D, d_out)
    bq = params["bq"].reshape(1, HE).astype(jnp.float32)
    bk = params["bk"].reshape(1, HE).astype(jnp.float32)
    bv = params["bv"].reshape(1, HD).astype(jnp.float32)
    bo = params["bo"].reshape(1, d_out).astype(jnp.float32)

    # Physical VMEM capacity (v5e/v6e: 128 MiB, v7x: 64 MiB per TC).
    try:
        vmem_cap = int(pltpu.get_tpu_info().vmem_capacity_bytes)
    except Exception:  # pragma: no cover - interpret / unknown backend
        vmem_cap = 64 << 20

    # Query-axis blocking: caps resident VMEM (smaller tiles on 64-MiB parts)
    # while keeping blocks (8,128)-compatible.
    tq_cap = 128 if vmem_cap <= (64 << 20) else 256
    tq = L if L <= tq_cap else tq_cap
    nq = pl.cdiv(L, tq)

    kernel = partial(_fused_attention_kernel, n_heads=H, d_keys=E, d_values=D,
                     scale=scale, compute_dtype=compute_dtype)

    # VMEM budget: double-buffered blocks + persistent scratch + headroom.
    blk_bytes = (
        _padded_bytes((tq, d_model), xbytes)           # q input block
        + 2 * _padded_bytes((S, d_model), xbytes)      # k, v input blocks
        + _padded_bytes((tq, d_out), xbytes)           # context output block
        + _padded_bytes((H, tq, S), abytes)            # attention output block
        + 2 * _padded_bytes((d_model, HE), cbytes)     # wq, wk
        + _padded_bytes((d_model, HD), cbytes)         # wv
        + _padded_bytes((HD, d_out), cbytes)           # wo
        + 2 * _padded_bytes((1, HE), 4)                # bq, bk
        + _padded_bytes((1, HD), 4)                    # bv
        + _padded_bytes((1, d_out), 4)                 # bo
    )
    scratch_bytes = (_padded_bytes((HE, S), cbytes)
                     + _padded_bytes((S, HD), cbytes)
                     + _padded_bytes((tq, HD), 4))
    vmem_limit = 2 * blk_bytes + scratch_bytes + (4 << 20)
    vmem_limit = max(vmem_limit, 32 << 20)
    vmem_limit = min(vmem_limit, vmem_cap - (2 << 20))   # never exceed physical

    flops = 2 * B * (L * d_model * HE          # q projection
                     + S * d_model * HE        # k projection
                     + S * d_model * HD        # v projection
                     + H * L * S * E           # Q K^T
                     + H * L * S * D           # attn @ V
                     + L * HD * d_out)         # output projection
    bytes_accessed = (xbytes * (B * L * d_model + 2 * B * S * d_model
                                + B * L * d_out)
                      + abytes * B * H * L * S
                      + cbytes * (2 * d_model * HE + d_model * HD + HD * d_out)
                      + 4 * (2 * HE + HD + d_out))
    cost = pl.CostEstimate(flops=flops, transcendentals=B * H * L * S,
                           bytes_accessed=bytes_accessed)

    out, attn = pl.pallas_call(
        kernel,
        out_shape=(
            jax.ShapeDtypeStruct((B, L, d_out), queries.dtype),
            jax.ShapeDtypeStruct((B, H, L, S), attn_dtype),
        ),
        grid=(B, nq),
        in_specs=[
            pl.BlockSpec((1, tq, d_model), lambda b, qi: (b, qi, 0)),   # queries
            pl.BlockSpec((1, S, d_model), lambda b, qi: (b, 0, 0)),     # keys
            pl.BlockSpec((1, S, d_model), lambda b, qi: (b, 0, 0)),     # values
            pl.BlockSpec((d_model, HE), lambda b, qi: (0, 0)),          # wq
            pl.BlockSpec((1, HE), lambda b, qi: (0, 0)),                # bq
            pl.BlockSpec((d_model, HE), lambda b, qi: (0, 0)),          # wk
            pl.BlockSpec((1, HE), lambda b, qi: (0, 0)),                # bk
            pl.BlockSpec((d_model, HD), lambda b, qi: (0, 0)),          # wv
            pl.BlockSpec((1, HD), lambda b, qi: (0, 0)),                # bv
            pl.BlockSpec((HD, d_out), lambda b, qi: (0, 0)),            # wo
            pl.BlockSpec((1, d_out), lambda b, qi: (0, 0)),             # bo
        ],
        out_specs=(
            pl.BlockSpec((1, tq, d_out), lambda b, qi: (b, qi, 0)),     # out
            pl.BlockSpec((1, H, tq, S), lambda b, qi: (b, 0, qi, 0)),   # attn
        ),
        scratch_shapes=[
            pltpu.VMEM((HE, S), compute_dtype),    # projected K^T (all heads)
            pltpu.VMEM((S, HD), compute_dtype),    # projected V (all heads)
            pltpu.VMEM((tq, HD), jnp.float32),     # per-tile concat'd context
        ],
        compiler_params=pltpu.CompilerParams(
            dimension_semantics=("parallel", "arbitrary"),
            vmem_limit_bytes=vmem_limit,
        ),
        cost_estimate=cost,
    )(queries, keys, values, wq, bq, wk, bk, wv, bv, wo, bo)
    return out, attn


# ----------------------------------------------------------------------------
# Deterministic parameter init (PyTorch nn.Linear-style uniform)
# ----------------------------------------------------------------------------
def init_params(key, d_model, n_heads, d_keys=None, d_values=None):
    d_keys = d_keys or d_model // n_heads
    d_values = d_values or d_model // n_heads
    dk = d_keys * n_heads
    dv = d_values * n_heads

    def linear_init(k, fan_in, fan_out):
        k1, k2 = jax.random.split(k)
        bound = 1.0 / math.sqrt(fan_in)
        w = jax.random.uniform(k1, (fan_in, fan_out), jnp.float32, -bound, bound)
        b = jax.random.uniform(k2, (fan_out,), jnp.float32, -bound, bound)
        return w, b

    ks = jax.random.split(key, 4)
    wq, bq = linear_init(ks[0], d_model, dk)
    wk, bk = linear_init(ks[1], d_model, dk)
    wv, bv = linear_init(ks[2], d_model, dv)
    wo, bo = linear_init(ks[3], dv, d_model)
    return dict(wq=wq, bq=bq, wk=wk, bk=bk, wv=wv, bv=bv, wo=wo, bo=bo)


# ----------------------------------------------------------------------------
# Pure-JAX reference for correctness check
# ----------------------------------------------------------------------------
def reference_forward(params, queries, keys, values, n_heads=4):
    B, L, _ = queries.shape
    _, S, _ = keys.shape
    H = n_heads
    q = (queries @ params["wq"] + params["bq"]).reshape(B, L, H, -1)
    k = (keys @ params["wk"] + params["bk"]).reshape(B, S, H, -1)
    v = (values @ params["wv"] + params["bv"]).reshape(B, S, H, -1)
    E = q.shape[-1]
    scores = jnp.einsum("blhe,bshe->bhls", q, k) / math.sqrt(E)
    attn = jax.nn.softmax(scores, axis=-1)
    out = jnp.einsum("bhls,bshd->blhd", attn, v).reshape(B, L, -1)
    return out @ params["wo"] + params["bo"], attn


if __name__ == "__main__":
    B, L, S = 2, 8, 8
    d_model, n_heads = 32, 4

    key = jax.random.PRNGKey(0)
    kp, kq, kk, kv = jax.random.split(key, 4)
    params = init_params(kp, d_model, n_heads)

    queries = jax.random.normal(kq, (B, L, d_model), jnp.float32)
    keys = jax.random.normal(kk, (B, S, d_model), jnp.float32)
    values = jax.random.normal(kv, (B, S, d_model), jnp.float32)

    ref_out, ref_attn = reference_forward(params, queries, keys, values,
                                          n_heads=n_heads)

    # Exact-semantics path (f32 MXU operands, f32 attn output).
    out, attn = attention_layer_forward(params, queries, keys, values,
                                        attn_mask=None, n_heads=n_heads,
                                        mix=False)
    out = jax.block_until_ready(out)
    attn = jax.block_until_ready(attn)
    assert out.shape == (B, L, d_model)
    assert attn.shape == (B, n_heads, L, S)
    assert jnp.allclose(out, ref_out, atol=1e-4, rtol=1e-4)
    assert jnp.allclose(attn, ref_attn, atol=1e-4, rtol=1e-4)

    # Performance path (bf16 MXU operands / scratch / attn output); looser
    # tolerance because bf16 operands trade ~1e-3 relative error for speed.
    out_bf, attn_bf = attention_layer_forward(params, queries, keys, values,
                                              attn_mask=None, n_heads=n_heads,
                                              mix=False,
                                              compute_dtype=jnp.bfloat16,
                                              attn_dtype=jnp.bfloat16)
    out_bf = jax.block_until_ready(out_bf)
    attn_bf = jax.block_until_ready(attn_bf)
    assert out_bf.shape == (B, L, d_model)
    assert attn_bf.shape == (B, n_heads, L, S)
    assert jnp.allclose(out_bf.astype(jnp.float32), ref_out,
                        atol=1e-1, rtol=1e-1)

    print("KERNEL_OK")
</pallas_src>

<mosaic_0001>
module attributes {stable_mosaic.version = 11 : i64} {
  func.func @_fused_attention_kernel(%arg0: i32, %arg1: i32, %arg2: memref<1x8x32xf32, #tpu.memory_space<vmem>>, %arg3: memref<1x8x32xf32, #tpu.memory_space<vmem>>, %arg4: memref<1x8x32xf32, #tpu.memory_space<vmem>>, %arg5: memref<32x32xf32, #tpu.memory_space<vmem>>, %arg6: memref<1x32xf32, #tpu.memory_space<vmem>>, %arg7: memref<32x32xf32, #tpu.memory_space<vmem>>, %arg8: memref<1x32xf32, #tpu.memory_space<vmem>>, %arg9: memref<32x32xf32, #tpu.memory_space<vmem>>, %arg10: memref<1x32xf32, #tpu.memory_space<vmem>>, %arg11: memref<32x32xf32, #tpu.memory_space<vmem>>, %arg12: memref<1x32xf32, #tpu.memory_space<vmem>>, %arg13: memref<1x8x32xf32, #tpu.memory_space<vmem>>, %arg14: memref<1x4x8x8xf32, #tpu.memory_space<vmem>>, %arg15: memref<32x8xf32, #tpu.memory_space<vmem>>, %arg16: memref<8x32xf32, #tpu.memory_space<vmem>>, %arg17: memref<8x32xf32, #tpu.memory_space<vmem>>) attributes {dimension_semantics = [#tpu.dimension_semantics<parallel>, #tpu.dimension_semantics<arbitrary>], iteration_bounds = array<i64: 2, 1>, scalar_prefetch = 0 : i64, scratch_operands = 3 : i64, tpu.core_type = #tpu.core_type<tc>, window_params = [{transform_indices = @transform_0, window_bounds = array<i64: 1, 8, 32>}, {transform_indices = @transform_1, window_bounds = array<i64: 1, 8, 32>}, {transform_indices = @transform_2, window_bounds = array<i64: 1, 8, 32>}, {pipeline_mode = #tpu.pipeline_mode<synchronous>, transform_indices = @transform_3, window_bounds = array<i64: 32, 32>}, {pipeline_mode = #tpu.pipeline_mode<synchronous>, transform_indices = @transform_4, window_bounds = array<i64: 1, 32>}, {pipeline_mode = #tpu.pipeline_mode<synchronous>, transform_indices = @transform_5, window_bounds = array<i64: 32, 32>}, {pipeline_mode = #tpu.pipeline_mode<synchronous>, transform_indices = @transform_6, window_bounds = array<i64: 1, 32>}, {pipeline_mode = #tpu.pipeline_mode<synchronous>, transform_indices = @transform_7, window_bounds = array<i64: 32, 32>}, {pipeline_mode = #tpu.pipeline_mode<synchronous>, transform_indices = @transform_8, window_bounds = array<i64: 1, 32>}, {pipeline_mode = #tpu.pipeline_mode<synchronous>, transform_indices = @transform_9, window_bounds = array<i64: 32, 32>}, {pipeline_mode = #tpu.pipeline_mode<synchronous>, transform_indices = @transform_10, window_bounds = array<i64: 1, 32>}, {transform_indices = @transform_11, window_bounds = array<i64: 1, 8, 32>}, {transform_indices = @transform_12, window_bounds = array<i64: 1, 4, 8, 8>}]} {
    %c0_i32 = arith.constant 0 : i32
    %0 = arith.cmpi eq, %arg1, %c0_i32 : i32
    %1 = arith.extui %0 : i1 to i32
    %c0_i32_0 = arith.constant 0 : i32
    %2 = arith.cmpi ne, %1, %c0_i32_0 : i32
    scf.if %2 {
      %c0_68 = arith.constant 0 : index
      %c0_69 = arith.constant 0 : index
      %c0_70 = arith.constant 0 : index
      %97 = vector.load %arg3[%c0_68, %c0_69, %c0_70] : memref<1x8x32xf32, #tpu.memory_space<vmem>>, vector<1x8x32xf32>
      %98 = vector.shape_cast %97 : vector<1x8x32xf32> to vector<8x32xf32>
      %c0_71 = arith.constant 0 : index
      %c0_72 = arith.constant 0 : index
      %c0_73 = arith.constant 0 : index
      %99 = vector.load %arg4[%c0_71, %c0_72, %c0_73] : memref<1x8x32xf32, #tpu.memory_space<vmem>>, vector<1x8x32xf32>
      %100 = vector.shape_cast %99 : vector<1x8x32xf32> to vector<8x32xf32>
      %c0_74 = arith.constant 0 : index
      %c0_75 = arith.constant 0 : index
      %101 = vector.load %arg7[%c0_74, %c0_75] : memref<32x32xf32, #tpu.memory_space<vmem>>, vector<32x32xf32>
      %cst_76 = arith.constant dense<0.000000e+00> : vector<8x32xf32>
      %102 = tpu.matmul %98, %101, %cst_76 {dimension_numbers = #tpu.dot_dimension_numbers<[1], [0], [0], [1], [0, 0, 1, 1], [], []>} : vector<8x32xf32>, vector<32x32xf32>, vector<8x32xf32> -> vector<8x32xf32>
      %c0_77 = arith.constant 0 : index
      %c0_78 = arith.constant 0 : index
      %103 = vector.load %arg8[%c0_77, %c0_78] : memref<1x32xf32, #tpu.memory_space<vmem>>, vector<1x32xf32>
      %104 = vector.broadcast %103 : vector<1x32xf32> to vector<8x32xf32>
      %105 = arith.addf %102, %104 : vector<8x32xf32>
      %c0_79 = arith.constant 0 : index
      %c0_80 = arith.constant 0 : index
      %106 = vector.load %arg9[%c0_79, %c0_80] : memref<32x32xf32, #tpu.memory_space<vmem>>, vector<32x32xf32>
      %cst_81 = arith.constant dense<0.000000e+00> : vector<8x32xf32>
      %107 = tpu.matmul %100, %106, %cst_81 {dimension_numbers = #tpu.dot_dimension_numbers<[1], [0], [0], [1], [0, 0, 1, 1], [], []>} : vector<8x32xf32>, vector<32x32xf32>, vector<8x32xf32> -> vector<8x32xf32>
      %c0_82 = arith.constant 0 : index
      %c0_83 = arith.constant 0 : index
      %108 = vector.load %arg10[%c0_82, %c0_83] : memref<1x32xf32, #tpu.memory_space<vmem>>, vector<1x32xf32>
      %109 = vector.broadcast %108 : vector<1x32xf32> to vector<8x32xf32>
      %110 = arith.addf %107, %109 : vector<8x32xf32>
      %111 = tpu.transpose %105, [1, 0] : vector<8x32xf32> -> vector<32x8xf32>
      %c0_84 = arith.constant 0 : index
      %c0_85 = arith.constant 0 : index
      %112 = vector.load %arg15[%c0_84, %c0_85] : memref<32x8xf32, #tpu.memory_space<vmem>>, vector<32x8xf32>
      tpu.vector_store %arg15[%c0_84, %c0_85], %111 {strides = array<i32>} : memref<32x8xf32, #tpu.memory_space<vmem>>, vector<32x8xf32>,
      %c0_86 = arith.constant 0 : index
      %c0_87 = arith.constant 0 : index
      %113 = vector.load %arg16[%c0_86, %c0_87] : memref<8x32xf32, #tpu.memory_space<vmem>>, vector<8x32xf32>
      tpu.vector_store %arg16[%c0_86, %c0_87], %110 {strides = array<i32>} : memref<8x32xf32, #tpu.memory_space<vmem>>, vector<8x32xf32>,
    } else {
    }
    %c0 = arith.constant 0 : index
    %c0_1 = arith.constant 0 : index
    %c0_2 = arith.constant 0 : index
    %3 = vector.load %arg2[%c0, %c0_1, %c0_2] : memref<1x8x32xf32, #tpu.memory_space<vmem>>, vector<1x8x32xf32>
    %4 = vector.shape_cast %3 : vector<1x8x32xf32> to vector<8x32xf32>
    %c0_3 = arith.constant 0 : index
    %c0_4 = arith.constant 0 : index
    %5 = vector.load %arg5[%c0_3, %c0_4] : memref<32x32xf32, #tpu.memory_space<vmem>>, vector<32x32xf32>
    %cst = arith.constant dense<0.000000e+00> : vector<8x32xf32>
    %6 = tpu.matmul %4, %5, %cst {dimension_numbers = #tpu.dot_dimension_numbers<[1], [0], [0], [1], [0, 0, 1, 1], [], []>} : vector<8x32xf32>, vector<32x32xf32>, vector<8x32xf32> -> vector<8x32xf32>
    %c0_5 = arith.constant 0 : index
    %c0_6 = arith.constant 0 : index
    %7 = vector.load %arg6[%c0_5, %c0_6] : memref<1x32xf32, #tpu.memory_space<vmem>>, vector<1x32xf32>
    %8 = vector.broadcast %7 : vector<1x32xf32> to vector<8x32xf32>
    %9 = arith.addf %6, %8 : vector<8x32xf32>
    %cst_7 = arith.constant 0.353553385 : f32
    %10 = vector.broadcast %cst_7 : f32 to vector<8x32xf32>
    %11 = arith.mulf %9, %10 : vector<8x32xf32>
    %12 = vector.extract_strided_slice %11 {offsets = [0, 0], sizes = [8, 8], strides = [1, 1]} : vector<8x32xf32> to vector<8x8xf32>
    %c0_8 = arith.constant 0 : index
    %c0_9 = arith.constant 0 : index
    %13 = vector.load %arg15[%c0_8, %c0_9] : memref<32x8xf32, #tpu.memory_space<vmem>>, vector<8x8xf32>
    %c0_10 = arith.constant 0 : index
    %c0_11 = arith.constant 0 : index
    %14 = vector.load %arg16[%c0_10, %c0_11] : memref<8x32xf32, #tpu.memory_space<vmem>>, vector<8x8xf32>
    %cst_12 = arith.constant dense<0.000000e+00> : vector<8x8xf32>
    %15 = tpu.matmul %12, %13, %cst_12 {dimension_numbers = #tpu.dot_dimension_numbers<[1], [0], [0], [1], [0, 0, 1, 1], [], []>} : vector<8x8xf32>, vector<8x8xf32>, vector<8x8xf32> -> vector<8x8xf32>
    %cst_13 = arith.constant dense<0xFF800000> : vector<8xf32>
    %16 = vector.multi_reduction <maximumf>, %15, %cst_13 [1] : vector<8x8xf32> to vector<8xf32>
    %17 = vector.shape_cast %16 : vector<8xf32> to vector<8x1xf32>
    %18 = vector.broadcast %17 : vector<8x1xf32> to vector<8x8xf32>
    %19 = arith.subf %15, %18 : vector<8x8xf32>
    %20 = math.exp %19 : vector<8x8xf32>
    %cst_14 = arith.constant dense<0.000000e+00> : vector<8xf32>
    %21 = vector.multi_reduction <add>, %20, %cst_14 [1] : vector<8x8xf32> to vector<8xf32>
    %22 = vector.shape_cast %21 : vector<8xf32> to vector<8x1xf32>
    %23 = tpu.reciprocal %22 : vector<8x1xf32> -> vector<8x1xf32>
    %24 = vector.broadcast %23 : vector<8x1xf32> to vector<8x8xf32>
    %25 = arith.mulf %20, %24 : vector<8x8xf32>
    %c0_15 = arith.constant 0 : index
    %c0_16 = arith.constant 0 : index
    %c0_17 = arith.constant 0 : index
    %c0_18 = arith.constant 0 : index
    %26 = vector.load %arg14[%c0_15, %c0_16, %c0_17, %c0_18] : memref<1x4x8x8xf32, #tpu.memory_space<vmem>>, vector<1x1x8x8xf32>
    %27 = vector.shape_cast %26 : vector<1x1x8x8xf32> to vector<8x8xf32>
    %28 = vector.shape_cast %25 : vector<8x8xf32> to vector<1x1x8x8xf32>
    tpu.vector_store %arg14[%c0_15, %c0_16, %c0_17, %c0_18], %28 {strides = array<i32>} : memref<1x4x8x8xf32, #tpu.memory_space<vmem>>, vector<1x1x8x8xf32>,
    %cst_19 = arith.constant dense<0.000000e+00> : vector<8x8xf32>
    %29 = tpu.matmul %25, %14, %cst_19 {dimension_numbers = #tpu.dot_dimension_numbers<[1], [0], [0], [1], [0, 0, 1, 1], [], []>} : vector<8x8xf32>, vector<8x8xf32>, vector<8x8xf32> -> vector<8x8xf32>
    %c0_20 = arith.constant 0 : index
    %c0_21 = arith.constant 0 : index
    %30 = vector.load %arg17[%c0_20, %c0_21] : memref<8x32xf32, #tpu.memory_space<vmem>>, vector<8x8xf32>
    tpu.vector_store %arg17[%c0_20, %c0_21], %29 {strides = array<i32>} : memref<8x32xf32, #tpu.memory_space<vmem>>, vector<8x8xf32>,
    %31 = vector.extract_strided_slice %11 {offsets = [0, 8], sizes = [8, 8], strides = [1, 1]} : vector<8x32xf32> to vector<8x8xf32>
    %c8 = arith.constant 8 : index
    %c0_22 = arith.constant 0 : index
    %32 = vector.load %arg15[%c8, %c0_22] : memref<32x8xf32, #tpu.memory_space<vmem>>, vector<8x8xf32>
    %c0_23 = arith.constant 0 : index
    %c8_24 = arith.constant 8 : index
    %33 = vector.load %arg16[%c0_23, %c8_24] : memref<8x32xf32, #tpu.memory_space<vmem>>, vector<8x8xf32>
    %cst_25 = arith.constant dense<0.000000e+00> : vector<8x8xf32>
    %34 = tpu.matmul %31, %32, %cst_25 {dimension_numbers = #tpu.dot_dimension_numbers<[1], [0], [0], [1], [0, 0, 1, 1], [], []>} : vector<8x8xf32>, vector<8x8xf32>, vector<8x8xf32> -> vector<8x8xf32>
    %cst_26 = arith.constant dense<0xFF800000> : vector<8xf32>
    %35 = vector.multi_reduction <maximumf>, %34, %cst_26 [1] : vector<8x8xf32> to vector<8xf32>
    %36 = vector.shape_cast %35 : vector<8xf32> to vector<8x1xf32>
    %37 = vector.broadcast %36 : vector<8x1xf32> to vector<8x8xf32>
    %38 = arith.subf %34, %37 : vector<8x8xf32>
    %39 = math.exp %38 : vector<8x8xf32>
    %cst_27 = arith.constant dense<0.000000e+00> : vector<8xf32>
    %40 = vector.multi_reduction <add>, %39, %cst_27 [1] : vector<8x8xf32> to vector<8xf32>
    %41 = vector.shape_cast %40 : vector<8xf32> to vector<8x1xf32>
    %42 = tpu.reciprocal %41 : vector<8x1xf32> -> vector<8x1xf32>
    %43 = vector.broadcast %42 : vector<8x1xf32> to vector<8x8xf32>
    %44 = arith.mulf %39, %43 : vector<8x8xf32>
    %c0_28 = arith.constant 0 : index
    %c1 = arith.constant 1 : index
    %c0_29 = arith.constant 0 : index
    %c0_30 = arith.constant 0 : index
    %45 = vector.load %arg14[%c0_28, %c1, %c0_29, %c0_30] : memref<1x4x8x8xf32, #tpu.memory_space<vmem>>, vector<1x1x8x8xf32>
    %46 = vector.shape_cast %45 : vector<1x1x8x8xf32> to vector<8x8xf32>
    %47 = vector.shape_cast %44 : vector<8x8xf32> to vector<1x1x8x8xf32>
    tpu.vector_store %arg14[%c0_28, %c1, %c0_29, %c0_30], %47 {strides = array<i32>} : memref<1x4x8x8xf32, #tpu.memory_space<vmem>>, vector<1x1x8x8xf32>,
    %cst_31 = arith.constant dense<0.000000e+00> : vector<8x8xf32>
    %48 = tpu.matmul %44, %33, %cst_31 {dimension_numbers = #tpu.dot_dimension_numbers<[1], [0], [0], [1], [0, 0, 1, 1], [], []>} : vector<8x8xf32>, vector<8x8xf32>, vector<8x8xf32> -> vector<8x8xf32>
    %c0_32 = arith.constant 0 : index
    %c8_33 = arith.constant 8 : index
    %49 = vector.load %arg17[%c0_32, %c8_33] : memref<8x32xf32, #tpu.memory_space<vmem>>, vector<8x8xf32>
    tpu.vector_store %arg17[%c0_32, %c8_33], %48 {strides = array<i32>} : memref<8x32xf32, #tpu.memory_space<vmem>>, vector<8x8xf32>,
    %50 = vector.extract_strided_slice %11 {offsets = [0, 16], sizes = [8, 8], strides = [1, 1]} : vector<8x32xf32> to vector<8x8xf32>
    %c16 = arith.constant 16 : index
    %c0_34 = arith.constant 0 : index
    %51 = vector.load %arg15[%c16, %c0_34] : memref<32x8xf32, #tpu.memory_space<vmem>>, vector<8x8xf32>
    %c0_35 = arith.constant 0 : index
    %c16_36 = arith.constant 16 : index
    %52 = vector.load %arg16[%c0_35, %c16_36] : memref<8x32xf32, #tpu.memory_space<vmem>>, vector<8x8xf32>
    %cst_37 = arith.constant dense<0.000000e+00> : vector<8x8xf32>
    %53 = tpu.matmul %50, %51, %cst_37 {dimension_numbers = #tpu.dot_dimension_numbers<[1], [0], [0], [1], [0, 0, 1, 1], [], []>} : vector<8x8xf32>, vector<8x8xf32>, vector<8x8xf32> -> vector<8x8xf32>
    %cst_38 = arith.constant dense<0xFF800000> : vector<8xf32>
    %54 = vector.multi_reduction <maximumf>, %53, %cst_38 [1] : vector<8x8xf32> to vector<8xf32>
    %55 = vector.shape_cast %54 : vector<8xf32> to vector<8x1xf32>
    %56 = vector.broadcast %55 : vector<8x1xf32> to vector<8x8xf32>
    %57 = arith.subf %53, %56 : vector<8x8xf32>
    %58 = math.exp %57 : vector<8x8xf32>
    %cst_39 = arith.constant dense<0.000000e+00> : vector<8xf32>
    %59 = vector.multi_reduction <add>, %58, %cst_39 [1] : vector<8x8xf32> to vector<8xf32>
    %60 = vector.shape_cast %59 : vector<8xf32> to vector<8x1xf32>
    %61 = tpu.reciprocal %60 : vector<8x1xf32> -> vector<8x1xf32>
    %62 = vector.broadcast %61 : vector<8x1xf32> to vector<8x8xf32>
    %63 = arith.mulf %58, %62 : vector<8x8xf32>
    %c0_40 = arith.constant 0 : index
    %c2 = arith.constant 2 : index
    %c0_41 = arith.constant 0 : index
    %c0_42 = arith.constant 0 : index
    %64 = vector.load %arg14[%c0_40, %c2, %c0_41, %c0_42] : memref<1x4x8x8xf32, #tpu.memory_space<vmem>>, vector<1x1x8x8xf32>
    %65 = vector.shape_cast %64 : vector<1x1x8x8xf32> to vector<8x8xf32>
    %66 = vector.shape_cast %63 : vector<8x8xf32> to vector<1x1x8x8xf32>
    tpu.vector_store %arg14[%c0_40, %c2, %c0_41, %c0_42], %66 {strides = array<i32>} : memref<1x4x8x8xf32, #tpu.memory_space<vmem>>, vector<1x1x8x8xf32>,
    %cst_43 = arith.constant dense<0.000000e+00> : vector<8x8xf32>
    %67 = tpu.matmul %63, %52, %cst_43 {dimension_numbers = #tpu.dot_dimension_numbers<[1], [0], [0], [1], [0, 0, 1, 1], [], []>} : vector<8x8xf32>, vector<8x8xf32>, vector<8x8xf32> -> vector<8x8xf32>
    %c0_44 = arith.constant 0 : index
    %c16_45 = arith.constant 16 : index
    %68 = vector.load %arg17[%c0_44, %c16_45] : memref<8x32xf32, #tpu.memory_space<vmem>>, vector<8x8xf32>
    tpu.vector_store %arg17[%c0_44, %c16_45], %67 {strides = array<i32>} : memref<8x32xf32, #tpu.memory_space<vmem>>, vector<8x8xf32>,
    %69 = vector.extract_strided_slice %11 {offsets = [0, 24], sizes = [8, 8], strides = [1, 1]} : vector<8x32xf32> to vector<8x8xf32>
    %c24 = arith.constant 24 : index
    %c0_46 = arith.constant 0 : index
    %70 = vector.load %arg15[%c24, %c0_46] : memref<32x8xf32, #tpu.memory_space<vmem>>, vector<8x8xf32>
    %c0_47 = arith.constant 0 : index
    %c24_48 = arith.constant 24 : index
    %71 = vector.load %arg16[%c0_47, %c24_48] : memref<8x32xf32, #tpu.memory_space<vmem>>, vector<8x8xf32>
    %cst_49 = arith.constant dense<0.000000e+00> : vector<8x8xf32>
    %72 = tpu.matmul %69, %70, %cst_49 {dimension_numbers = #tpu.dot_dimension_numbers<[1], [0], [0], [1], [0, 0, 1, 1], [], []>} : vector<8x8xf32>, vector<8x8xf32>, vector<8x8xf32> -> vector<8x8xf32>
    %cst_50 = arith.constant dense<0xFF800000> : vector<8xf32>
    %73 = vector.multi_reduction <maximumf>, %72, %cst_50 [1] : vector<8x8xf32> to vector<8xf32>
    %74 = vector.shape_cast %73 : vector<8xf32> to vector<8x1xf32>
    %75 = vector.broadcast %74 : vector<8x1xf32> to vector<8x8xf32>
    %76 = arith.subf %72, %75 : vector<8x8xf32>
    %77 = math.exp %76 : vector<8x8xf32>
    %cst_51 = arith.constant dense<0.000000e+00> : vector<8xf32>
    %78 = vector.multi_reduction <add>, %77, %cst_51 [1] : vector<8x8xf32> to vector<8xf32>
    %79 = vector.shape_cast %78 : vector<8xf32> to vector<8x1xf32>
    %80 = tpu.reciprocal %79 : vector<8x1xf32> -> vector<8x1xf32>
    %81 = vector.broadcast %80 : vector<8x1xf32> to vector<8x8xf32>
    %82 = arith.mulf %77, %81 : vector<8x8xf32>
    %c0_52 = arith.constant 0 : index
    %c3 = arith.constant 3 : index
    %c0_53 = arith.constant 0 : index
    %c0_54 = arith.constant 0 : index
    %83 = vector.load %arg14[%c0_52, %c3, %c0_53, %c0_54] : memref<1x4x8x8xf32, #tpu.memory_space<vmem>>, vector<1x1x8x8xf32>
    %84 = vector.shape_cast %83 : vector<1x1x8x8xf32> to vector<8x8xf32>
    %85 = vector.shape_cast %82 : vector<8x8xf32> to vector<1x1x8x8xf32>
    tpu.vector_store %arg14[%c0_52, %c3, %c0_53, %c0_54], %85 {strides = array<i32>} : memref<1x4x8x8xf32, #tpu.memory_space<vmem>>, vector<1x1x8x8xf32>,
    %cst_55 = arith.constant dense<0.000000e+00> : vector<8x8xf32>
    %86 = tpu.matmul %82, %71, %cst_55 {dimension_numbers = #tpu.dot_dimension_numbers<[1], [0], [0], [1], [0, 0, 1, 1], [], []>} : vector<8x8xf32>, vector<8x8xf32>, vector<8x8xf32> -> vector<8x8xf32>
    %c0_56 = arith.constant 0 : index
    %c24_57 = arith.constant 24 : index
    %87 = vector.load %arg17[%c0_56, %c24_57] : memref<8x32xf32, #tpu.memory_space<vmem>>, vector<8x8xf32>
    tpu.vector_store %arg17[%c0_56, %c24_57], %86 {strides = array<i32>} : memref<8x32xf32, #tpu.memory_space<vmem>>, vector<8x8xf32>,
    %c0_58 = arith.constant 0 : index
    %c0_59 = arith.constant 0 : index
    %88 = vector.load %arg17[%c0_58, %c0_59] : memref<8x32xf32, #tpu.memory_space<vmem>>, vector<8x32xf32>
    %c0_60 = arith.constant 0 : index
    %c0_61 = arith.constant 0 : index
    %89 = vector.load %arg11[%c0_60, %c0_61] : memref<32x32xf32, #tpu.memory_space<vmem>>, vector<32x32xf32>
    %cst_62 = arith.constant dense<0.000000e+00> : vector<8x32xf32>
    %90 = tpu.matmul %88, %89, %cst_62 {dimension_numbers = #tpu.dot_dimension_numbers<[1], [0], [0], [1], [0, 0, 1, 1], [], []>} : vector<8x32xf32>, vector<32x32xf32>, vector<8x32xf32> -> vector<8x32xf32>
    %c0_63 = arith.constant 0 : index
    %c0_64 = arith.constant 0 : index
    %91 = vector.load %arg12[%c0_63, %c0_64] : memref<1x32xf32, #tpu.memory_space<vmem>>, vector<1x32xf32>
    %92 = vector.broadcast %91 : vector<1x32xf32> to vector<8x32xf32>
    %93 = arith.addf %90, %92 : vector<8x32xf32>
    %c0_65 = arith.constant 0 : index
    %c0_66 = arith.constant 0 : index
    %c0_67 = arith.constant 0 : index
    %94 = vector.load %arg13[%c0_65, %c0_66, %c0_67] : memref<1x8x32xf32, #tpu.memory_space<vmem>>, vector<1x8x32xf32>
    %95 = vector.shape_cast %94 : vector<1x8x32xf32> to vector<8x32xf32>
    %96 = vector.shape_cast %93 : vector<8x32xf32> to vector<1x8x32xf32>
    tpu.vector_store %arg13[%c0_65, %c0_66, %c0_67], %96 {strides = array<i32>} : memref<1x8x32xf32, #tpu.memory_space<vmem>>, vector<1x8x32xf32>,
    return
  }
  func.func @transform_0(%arg0: i32, %arg1: i32) -> (i32, i32, i32) {
    %c0_i32 = arith.constant 0 : i32
    %c0_i32_0 = arith.constant 0 : i32
    return %arg0, %arg1, %c0_i32 : i32, i32, i32
  }
  func.func @transform_1(%arg0: i32, %arg1: i32) -> (i32, i32, i32) {
    %c0_i32 = arith.constant 0 : i32
    %c0_i32_0 = arith.constant 0 : i32
    %c0_i32_1 = arith.constant 0 : i32
    return %arg0, %c0_i32, %c0_i32_0 : i32, i32, i32
  }
  func.func @transform_2(%arg0: i32, %arg1: i32) -> (i32, i32, i32) {
    %c0_i32 = arith.constant 0 : i32
    %c0_i32_0 = arith.constant 0 : i32
    %c0_i32_1 = arith.constant 0 : i32
    return %arg0, %c0_i32, %c0_i32_0 : i32, i32, i32
  }
  func.func @transform_3(%arg0: i32, %arg1: i32) -> (i32, i32) {
    %c0_i32 = arith.constant 0 : i32
    %c0_i32_0 = arith.constant 0 : i32
    %c0_i32_1 = arith.constant 0 : i32
    return %c0_i32, %c0_i32_0 : i32, i32
  }
  func.func @transform_4(%arg0: i32, %arg1: i32) -> (i32, i32) {
    %c0_i32 = arith.constant 0 : i32
    %c0_i32_0 = arith.constant 0 : i32
    %c0_i32_1 = arith.constant 0 : i32
    return %c0_i32, %c0_i32_0 : i32, i32
  }
  func.func @transform_5(%arg0: i32, %arg1: i32) -> (i32, i32) {
    %c0_i32 = arith.constant 0 : i32
    %c0_i32_0 = arith.constant 0 : i32
    %c0_i32_1 = arith.constant 0 : i32
    return %c0_i32, %c0_i32_0 : i32, i32
  }
  func.func @transform_6(%arg0: i32, %arg1: i32) -> (i32, i32) {
    %c0_i32 = arith.constant 0 : i32
    %c0_i32_0 = arith.constant 0 : i32
    %c0_i32_1 = arith.constant 0 : i32
    return %c0_i32, %c0_i32_0 : i32, i32
  }
  func.func @transform_7(%arg0: i32, %arg1: i32) -> (i32, i32) {
    %c0_i32 = arith.constant 0 : i32
    %c0_i32_0 = arith.constant 0 : i32
    %c0_i32_1 = arith.constant 0 : i32
    return %c0_i32, %c0_i32_0 : i32, i32
  }
  func.func @transform_8(%arg0: i32, %arg1: i32) -> (i32, i32) {
    %c0_i32 = arith.constant 0 : i32
    %c0_i32_0 = arith.constant 0 : i32
    %c0_i32_1 = arith.constant 0 : i32
    return %c0_i32, %c0_i32_0 : i32, i32
  }
  func.func @transform_9(%arg0: i32, %arg1: i32) -> (i32, i32) {
    %c0_i32 = arith.constant 0 : i32
    %c0_i32_0 = arith.constant 0 : i32
    %c0_i32_1 = arith.constant 0 : i32
    return %c0_i32, %c0_i32_0 : i32, i32
  }
  func.func @transform_10(%arg0: i32, %arg1: i32) -> (i32, i32) {
    %c0_i32 = arith.constant 0 : i32
    %c0_i32_0 = arith.constant 0 : i32
    %c0_i32_1 = arith.constant 0 : i32
    return %c0_i32, %c0_i32_0 : i32, i32
  }
  func.func @transform_11(%arg0: i32, %arg1: i32) -> (i32, i32, i32) {
    %c0_i32 = arith.constant 0 : i32
    %c0_i32_0 = arith.constant 0 : i32
    return %arg0, %arg1, %c0_i32 : i32, i32, i32
  }
  func.func @transform_12(%arg0: i32, %arg1: i32) -> (i32, i32, i32, i32) {
    %c0_i32 = arith.constant 0 : i32
    %c0_i32_0 = arith.constant 0 : i32
    %c0_i32_1 = arith.constant 0 : i32
    return %arg0, %c0_i32, %arg1, %c0_i32_0 : i32, i32, i32, i32
  }
}

</mosaic_0001>

<llo_original>
// kernel: tpu_custom_call.1
$region0: #{tpu_custom_call.1}
  #allocation0 [shape = 'u32[]', space=smem, size = 0x4, offset = 0x4, fixed_abs, tag = 'smem constant byte address 0x4 - core index']
  #allocation1 [shape = 'u32[72,128]{1,0:T(1,128)}', space=vmem, size = 0x9000, scoped, tag = 'internal scratch']
  #allocation2 [shape = 'f32[32,8]{1,0:T(8,128)}', space=vmem, size = 0x4000, scoped, tag = 'scratch operand']
  #allocation3 [shape = 'f32[8,32]{1,0:T(8,128)}', space=vmem, size = 0x1000, scoped, tag = 'scratch operand']
  #allocation4 [shape = 'f32[8,32]{1,0:T(8,128)}', space=vmem, size = 0x1000, scoped, tag = 'scratch operand']
  %s0 = inlined_call_operand.hbm [shape: f32[2,8,32], index: 0, kind: input, shape index: {}]
  %s1 = inlined_call_operand.hbm [shape: f32[2,8,32], index: 1, kind: input, shape index: {}]
  %s2 = inlined_call_operand.hbm [shape: f32[2,8,32], index: 2, kind: input, shape index: {}]
  %s3 = inlined_call_operand.hbm [shape: f32[32,32], index: 3, kind: input, shape index: {}]
  %s4 = inlined_call_operand.vmem [shape: f32[1,32], index: 4, kind: input, shape index: {}]
  %s5 = inlined_call_operand.hbm [shape: f32[32,32], index: 5, kind: input, shape index: {}]
  %s6 = inlined_call_operand.vmem [shape: f32[1,32], index: 6, kind: input, shape index: {}]
  %s7 = inlined_call_operand.hbm [shape: f32[32,32], index: 7, kind: input, shape index: {}]
  %s8 = inlined_call_operand.vmem [shape: f32[1,32], index: 8, kind: input, shape index: {}]
  %s9 = inlined_call_operand.hbm [shape: f32[32,32], index: 9, kind: input, shape index: {}]
  %s10 = inlined_call_operand.vmem [shape: f32[1,32], index: 10, kind: input, shape index: {}]
  %s11 = inlined_call_operand.hbm [shape: f32[2,8,32], index: 11, kind: output, shape index: {0}]
  %s12 = inlined_call_operand.hbm [shape: f32[2,4,8,8], index: 12, kind: output, shape index: {1}]
  %13 = xla_tuple %s11, %s12
  %s14 = sld [smem:[#allocation0]]
  $region117: #{tpu_custom_call.1} parent=0
    _
  %s16 = ssub.s32 1, %s14
  %s17 = scalar_select 0, %s16, %s14
  $region1: #{tpu_custom_call.1} parent=0
    #allocation5 [shape = 'u8[8192]{0}', space=vmem, size = 0x2000, scoped, tag = 'input window, operand 0']
    #allocation6 [shape = 's32[2]{0}', space=sflag, size = 0x8, scoped, tag = 'scoped memory for tpu_custom_call.1']
    #allocation7 [shape = 's32[2]{0}', space=sflag, size = 0x8, scoped, tag = 'scoped memory for tpu_custom_call.1']
    #allocation8 [shape = 'u8[8192]{0}', space=vmem, size = 0x2000, scoped, tag = 'input window, operand 1']
    #allocation9 [shape = 's32[2]{0}', space=sflag, size = 0x8, scoped, tag = 'scoped memory for tpu_custom_call.1']
    #allocation10 [shape = 'u8[8192]{0}', space=vmem, size = 0x2000, scoped, tag = 'input window, operand 2']
    #allocation11 [shape = 'u8[16384]{0}', space=vmem, size = 0x4000, scoped, tag = 'input window, operand 3, single buffered']
    #allocation12 [shape = 's32[1]{0}', space=sflag, size = 0x4, scoped, tag = 'scoped memory for tpu_custom_call.1']
    #allocation13 [shape = 'u8[16384]{0}', space=vmem, size = 0x4000, scoped, tag = 'input window, operand 5, single buffered']
    #allocation14 [shape = 'u8[16384]{0}', space=vmem, size = 0x4000, scoped, tag = 'input window, operand 7, single buffered']
    #allocation15 [shape = 's32[1]{0}', space=sflag, size = 0x4, scoped, tag = 'scoped memory for tpu_custom_call.1']
    #allocation16 [shape = 'u8[16384]{0}', space=vmem, size = 0x4000, scoped, tag = 'input window, operand 9, single buffered']
    #allocation17 [shape = 'u8[8192]{0}', space=vmem, size = 0x2000, scoped, tag = 'output window, operand 0']
    #allocation18 [shape = 'u8[32768]{0}', space=vmem, size = 0x8000, scoped, tag = 'output window, operand 1']
    #allocation19 [shape = 's32[2]{0}', space=sflag, size = 0x8, scoped, tag = 'scoped memory for tpu_custom_call.1']
    %18 = vsyncpa [#allocation6], 0
    %s19 = scalar_lea.sflag [#allocation6], 1
    %20 = vsyncpa %s19, 0
    %21 = vsyncpa [#allocation9], 0
    %s22 = scalar_lea.sflag [#allocation9], 1
    %23 = vsyncpa %s22, 0
    %24 = vsyncpa [#allocation12], 0
    %25 = vsyncpa [#allocation15], 0
    %26 = vsyncpa [#allocation7], 0
    %s27 = scalar_lea.sflag [#allocation7], 1
    %28 = vsyncpa %s27, 0
    %29 = vsyncpa [#allocation19], 0
    %s30 = scalar_lea.sflag [#allocation19], 1
    %31 = vsyncpa %s30, 0
    loop: start=0, step=1, limit=4
    $region2: #{tpu_custom_call.1} parent=1 // loop_pre_header
      _
    $region3: #{tpu_custom_call.1} parent=1 // loop_header
      %s33 = sphi 0, %s37
      %p34 = scmp.ge.s32.totalorder %s33, 4
      %s40 = sphi 0, %s52
      %s41 = sphi 0, %s48
      %s42 = sphi 0, %s40
      %s43 = sphi 0, %s41
      %s44 = sphi 0, %s42
      %s45 = sphi 0, %s43
      %s57 = sphi 0, %s59
      %s60 = sphi 0, %s57
      %s61 = sphi 0, %s60
      %s77 = sphi 0, %s61
      %s83 = sphi 0, %s85
      %s86 = sphi 0, %s83
      %s87 = sphi 0, %s86
      %s103 = sphi 0, %s87
      %s109 = sphi 0, %s111
      %s112 = sphi 0, %s109
      %s113 = sphi 0, %s112
      %s129 = sphi 0, %s113
      %s133 = sphi 0, %s133
      %s135 = sphi 0, %s133
      %s136 = sphi 0, %s135
      %s150 = sphi 0, %s136
      %s154 = sphi 0, %s154
      %s156 = sphi 0, %s154
      %s157 = sphi 0, %s156
      %s171 = sphi 0, %s157
      %s175 = sphi 0, %s175
      %s177 = sphi 0, %s175
      %s178 = sphi 0, %s177
      %s192 = sphi 0, %s178
      %s196 = sphi 0, %s196
      %s198 = sphi 0, %s196
      %s199 = sphi 0, %s198
      %s213 = sphi 0, %s199
      %s217 = sphi 0, %s217
      %s219 = sphi 0, %s217
      %s220 = sphi 0, %s219
      %s234 = sphi 0, %s220
      %s238 = sphi 0, %s238
      %s240 = sphi 0, %s238
      %s241 = sphi 0, %s240
      %s255 = sphi 0, %s241
      %s259 = sphi 0, %s259
      %s261 = sphi 0, %s259
      %s262 = sphi 0, %s261
      %s276 = sphi 0, %s262
      %s280 = sphi 0, %s280
      %s282 = sphi 0, %s280
      %s283 = sphi 0, %s282
      %s297 = sphi 0, %s283
      %s305 = sphi 0, %s307
      %s308 = sphi 0, %s305
      %s309 = sphi 0, %s308
      %s325 = sphi 0, %s309
      %s333 = sphi 0, %s335
      %s336 = sphi 0, %s333
      %s337 = sphi 0, %s336
      %s353 = sphi 0, %s337
    $region4: #{tpu_custom_call.1} parent=1 // loop_header_branch
      %36 = sbr.rel (%p34) target = $region8
    $region5: #{tpu_custom_call.1} parent=1 // loop_body
      %s38 = ssub.s32 %s33, 1
      %s39 = ssub.s32 %s33, 2
      %s46 = sadd.s32 1, %s41
      %p47 = scmp.ge.s32.totalorder %s46, 1
      %s48 = scalar_select %p47, 0, %s46
      %s49 = sadd.s32 1, %s40
      %s50 = scalar_select %p47, %s49, %s40
      %p51 = scmp.ge.s32.totalorder %s50, 2
      %s52 = scalar_select %p51, 0, %s50
      %s53 = ssub.s32 %s40, %s52
      %s54 = ssub.s32 %s41, %s48
      %s55 = sor.u32 %s53, %s54
      %p56 = scmp.eq.s32.totalorder %s55, 0
      %s58 = sadd.s32 %s57, 1
      %s59 = scalar_select %p56, %s57, %s58
      %p62 = pneg %p56
      %p63 = scmp.eq.s32.totalorder %s33, 1
      %p64 = por %p62, %p63
      %p65 = scmp.ne.s32.totalorder %s57, %s60
      %p66 = scmp.eq.s32.totalorder %s33, 0
      %p67 = por %p65, %p66
      %p68 = scmp.ne.s32.totalorder %s57, %s60
      %p69 = scmp.eq.s32.totalorder %s38, 1
      %p70 = por %p68, %p69
      %p71 = scmp.ne.s32.totalorder %s60, %s61
      %p72 = scmp.eq.s32.totalorder %s38, 0
      %p73 = por %p71, %p72
      %p74 = scmp.ne.s32.totalorder %s60, %s61
      %p75 = scmp.eq.s32.totalorder %s39, 1
      %p76 = por %p74, %p75
      %p78 = scmp.ne.s32.totalorder %s61, %s77
      %p79 = scmp.eq.s32.totalorder %s39, 0
      %p80 = por %p78, %p79
      %s81 = ssub.s32 %s40, %s52
      %p82 = scmp.eq.s32.totalorder %s81, 0
      %s84 = sadd.s32 %s83, 1
      %s85 = scalar_select %p82, %s83, %s84
      %p88 = pneg %p82
      %p89 = scmp.eq.s32.totalorder %s33, 1
      %p90 = por %p88, %p89
      %p91 = scmp.ne.s32.totalorder %s83, %s86
      %p92 = scmp.eq.s32.totalorder %s33, 0
      %p93 = por %p91, %p92
      %p94 = scmp.ne.s32.totalorder %s83, %s86
      %p95 = scmp.eq.s32.totalorder %s38, 1
      %p96 = por %p94, %p95
      %p97 = scmp.ne.s32.totalorder %s86, %s87
      %p98 = scmp.eq.s32.totalorder %s38, 0
      %p99 = por %p97, %p98
      %p100 = scmp.ne.s32.totalorder %s86, %s87
      %p101 = scmp.eq.s32.totalorder %s39, 1
      %p102 = por %p100, %p101
      %p104 = scmp.ne.s32.totalorder %s87, %s103
      %p105 = scmp.eq.s32.totalorder %s39, 0
      %p106 = por %p104, %p105
      %s107 = ssub.s32 %s40, %s52
      %p108 = scmp.eq.s32.totalorder %s107, 0
      %s110 = sadd.s32 %s109, 1
      %s111 = scalar_select %p108, %s109, %s110
      %p114 = pneg %p108
      %p115 = scmp.eq.s32.totalorder %s33, 1
      %p116 = por %p114, %p115
      %p117 = scmp.ne.s32.totalorder %s109, %s112
      %p118 = scmp.eq.s32.totalorder %s33, 0
      %p119 = por %p117, %p118
      %p120 = scmp.ne.s32.totalorder %s109, %s112
      %p121 = scmp.eq.s32.totalorder %s38, 1
      %p122 = por %p120, %p121
      %p123 = scmp.ne.s32.totalorder %s112, %s113
      %p124 = scmp.eq.s32.totalorder %s38, 0
      %p125 = por %p123, %p124
      %p126 = scmp.ne.s32.totalorder %s112, %s113
      %p127 = scmp.eq.s32.totalorder %s39, 1
      %p128 = por %p126, %p127
      %p130 = scmp.ne.s32.totalorder %s113, %s129
      %p131 = scmp.eq.s32.totalorder %s39, 0
      %p132 = por %p130, %p131
      %s134 = sadd.s32 %s133, 1
      %p137 = scmp.eq.s32.totalorder %s33, 1
      %p138 = scmp.ne.s32.totalorder %s133, %s135
      %p139 = scmp.eq.s32.totalorder %s33, 0
      %p140 = por %p138, %p139
      %p141 = scmp.ne.s32.totalorder %s133, %s135
      %p142 = scmp.eq.s32.totalorder %s38, 1
      %p143 = por %p141, %p142
      %p144 = scmp.ne.s32.totalorder %s135, %s136
      %p145 = scmp.eq.s32.totalorder %s38, 0
      %p146 = por %p144, %p145
      %p147 = scmp.ne.s32.totalorder %s135, %s136
      %p148 = scmp.eq.s32.totalorder %s39, 1
      %p149 = por %p147, %p148
      %p151 = scmp.ne.s32.totalorder %s136, %s150
      %p152 = scmp.eq.s32.totalorder %s39, 0
      %p153 = por %p151, %p152
      %s155 = sadd.s32 %s154, 1
      %p158 = scmp.eq.s32.totalorder %s33, 1
      %p159 = scmp.ne.s32.totalorder %s154, %s156
      %p160 = scmp.eq.s32.totalorder %s33, 0
      %p161 = por %p159, %p160
      %p162 = scmp.ne.s32.totalorder %s154, %s156
      %p163 = scmp.eq.s32.totalorder %s38, 1
      %p164 = por %p162, %p163
      %p165 = scmp.ne.s32.totalorder %s156, %s157
      %p166 = scmp.eq.s32.totalorder %s38, 0
      %p167 = por %p165, %p166
      %p168 = scmp.ne.s32.totalorder %s156, %s157
      %p169 = scmp.eq.s32.totalorder %s39, 1
      %p170 = por %p168, %p169
      %p172 = scmp.ne.s32.totalorder %s157, %s171
      %p173 = scmp.eq.s32.totalorder %s39, 0
      %p174 = por %p172, %p173
      %s176 = sadd.s32 %s175, 1
      %p179 = scmp.eq.s32.totalorder %s33, 1
      %p180 = scmp.ne.s32.totalorder %s175, %s177
      %p181 = scmp.eq.s32.totalorder %s33, 0
      %p182 = por %p180, %p181
      %p183 = scmp.ne.s32.totalorder %s175, %s177
      %p184 = scmp.eq.s32.totalorder %s38, 1
      %p185 = por %p183, %p184
      %p186 = scmp.ne.s32.totalorder %s177, %s178
      %p187 = scmp.eq.s32.totalorder %s38, 0
      %p188 = por %p186, %p187
      %p189 = scmp.ne.s32.totalorder %s177, %s178
      %p190 = scmp.eq.s32.totalorder %s39, 1
      %p191 = por %p189, %p190
      %p193 = scmp.ne.s32.totalorder %s178, %s192
      %p194 = scmp.eq.s32.totalorder %s39, 0
      %p195 = por %p193, %p194
      %s197 = sadd.s32 %s196, 1
      %p200 = scmp.eq.s32.totalorder %s33, 1
      %p201 = scmp.ne.s32.totalorder %s196, %s198
      %p202 = scmp.eq.s32.totalorder %s33, 0
      %p203 = por %p201, %p202
      %p204 = scmp.ne.s32.totalorder %s196, %s198
      %p205 = scmp.eq.s32.totalorder %s38, 1
      %p206 = por %p204, %p205
      %p207 = scmp.ne.s32.totalorder %s198, %s199
      %p208 = scmp.eq.s32.totalorder %s38, 0
      %p209 = por %p207, %p208
      %p210 = scmp.ne.s32.totalorder %s198, %s199
      %p211 = scmp.eq.s32.totalorder %s39, 1
      %p212 = por %p210, %p211
      %p214 = scmp.ne.s32.totalorder %s199, %s213
      %p215 = scmp.eq.s32.totalorder %s39, 0
      %p216 = por %p214, %p215
      %s218 = sadd.s32 %s217, 1
      %p221 = scmp.eq.s32.totalorder %s33, 1
      %p222 = scmp.ne.s32.totalorder %s217, %s219
      %p223 = scmp.eq.s32.totalorder %s33, 0
      %p224 = por %p222, %p223
      %p225 = scmp.ne.s32.totalorder %s217, %s219
      %p226 = scmp.eq.s32.totalorder %s38, 1
      %p227 = por %p225, %p226
      %p228 = scmp.ne.s32.totalorder %s219, %s220
      %p229 = scmp.eq.s32.totalorder %s38, 0
      %p230 = por %p228, %p229
      %p231 = scmp.ne.s32.totalorder %s219, %s220
      %p232 = scmp.eq.s32.totalorder %s39, 1
      %p233 = por %p231, %p232
      %p235 = scmp.ne.s32.totalorder %s220, %s234
      %p236 = scmp.eq.s32.totalorder %s39, 0
      %p237 = por %p235, %p236
      %s239 = sadd.s32 %s238, 1
      %p242 = scmp.eq.s32.totalorder %s33, 1
      %p243 = scmp.ne.s32.totalorder %s238, %s240
      %p244 = scmp.eq.s32.totalorder %s33, 0
      %p245 = por %p243, %p244
      %p246 = scmp.ne.s32.totalorder %s238, %s240
      %p247 = scmp.eq.s32.totalorder %s38, 1
      %p248 = por %p246, %p247
      %p249 = scmp.ne.s32.totalorder %s240, %s241
      %p250 = scmp.eq.s32.totalorder %s38, 0
      %p251 = por %p249, %p250
      %p252 = scmp.ne.s32.totalorder %s240, %s241
      %p253 = scmp.eq.s32.totalorder %s39, 1
      %p254 = por %p252, %p253
      %p256 = scmp.ne.s32.totalorder %s241, %s255
      %p257 = scmp.eq.s32.totalorder %s39, 0
      %p258 = por %p256, %p257
      %s260 = sadd.s32 %s259, 1
      %p263 = scmp.eq.s32.totalorder %s33, 1
      %p264 = scmp.ne.s32.totalorder %s259, %s261
      %p265 = scmp.eq.s32.totalorder %s33, 0
      %p266 = por %p264, %p265
      %p267 = scmp.ne.s32.totalorder %s259, %s261
      %p268 = scmp.eq.s32.totalorder %s38, 1
      %p269 = por %p267, %p268
      %p270 = scmp.ne.s32.totalorder %s261, %s262
      %p271 = scmp.eq.s32.totalorder %s38, 0
      %p272 = por %p270, %p271
      %p273 = scmp.ne.s32.totalorder %s261, %s262
      %p274 = scmp.eq.s32.totalorder %s39, 1
      %p275 = por %p273, %p274
      %p277 = scmp.ne.s32.totalorder %s262, %s276
      %p278 = scmp.eq.s32.totalorder %s39, 0
      %p279 = por %p277, %p278
      %s281 = sadd.s32 %s280, 1
      %p284 = scmp.eq.s32.totalorder %s33, 1
      %p285 = scmp.ne.s32.totalorder %s280, %s282
      %p286 = scmp.eq.s32.totalorder %s33, 0
      %p287 = por %p285, %p286
      %p288 = scmp.ne.s32.totalorder %s280, %s282
      %p289 = scmp.eq.s32.totalorder %s38, 1
      %p290 = por %p288, %p289
      %p291 = scmp.ne.s32.totalorder %s282, %s283
      %p292 = scmp.eq.s32.totalorder %s38, 0
      %p293 = por %p291, %p292
      %p294 = scmp.ne.s32.totalorder %s282, %s283
      %p295 = scmp.eq.s32.totalorder %s39, 1
      %p296 = por %p294, %p295
      %p298 = scmp.ne.s32.totalorder %s283, %s297
      %p299 = scmp.eq.s32.totalorder %s39, 0
      %p300 = por %p298, %p299
      %s301 = ssub.s32 %s40, %s52
      %s302 = ssub.s32 %s41, %s48
      %s303 = sor.u32 %s301, %s302
      %p304 = scmp.eq.s32.totalorder %s303, 0
      %s306 = sadd.s32 %s305, 1
      %s307 = scalar_select %p304, %s305, %s306
      %p310 = pneg %p304
      %p311 = scmp.eq.s32.totalorder %s33, 1
      %p312 = por %p310, %p311
      %p313 = scmp.ne.s32.totalorder %s305, %s308
      %p314 = scmp.eq.s32.totalorder %s33, 0
      %p315 = por %p313, %p314
      %p316 = scmp.ne.s32.totalorder %s305, %s308
      %p317 = scmp.eq.s32.totalorder %s38, 1
      %p318 = por %p316, %p317
      %p319 = scmp.ne.s32.totalorder %s308, %s309
      %p320 = scmp.eq.s32.totalorder %s38, 0
      %p321 = por %p319, %p320
      %p322 = scmp.ne.s32.totalorder %s308, %s309
      %p323 = scmp.eq.s32.totalorder %s39, 1
      %p324 = por %p322, %p323
      %p326 = scmp.ne.s32.totalorder %s309, %s325
      %p327 = scmp.eq.s32.totalorder %s39, 0
      %p328 = por %p326, %p327
      %s329 = ssub.s32 %s40, %s52
      %s330 = ssub.s32 %s41, %s48
      %s331 = sor.u32 %s329, %s330
      %p332 = scmp.eq.s32.totalorder %s331, 0
      %s334 = sadd.s32 %s333, 1
      %s335 = scalar_select %p332, %s333, %s334
      %p338 = pneg %p332
      %p339 = scmp.eq.s32.totalorder %s33, 1
      %p340 = por %p338, %p339
      %p341 = scmp.ne.s32.totalorder %s333, %s336
      %p342 = scmp.eq.s32.totalorder %s33, 0
      %p343 = por %p341, %p342
      %p344 = scmp.ne.s32.totalorder %s333, %s336
      %p345 = scmp.eq.s32.totalorder %s38, 1
      %p346 = por %p344, %p345
      %p347 = scmp.ne.s32.totalorder %s336, %s337
      %p348 = scmp.eq.s32.totalorder %s38, 0
      %p349 = por %p347, %p348
      %p350 = scmp.ne.s32.totalorder %s336, %s337
      %p351 = scmp.eq.s32.totalorder %s39, 1
      %p352 = por %p350, %p351
      %p354 = scmp.ne.s32.totalorder %s337, %s353
      %p355 = scmp.eq.s32.totalorder %s39, 0
      %p356 = por %p354, %p355
      %p357 = scmp.le.s32.totalorder 1, %s33
      %p358 = scmp.lt.s32.totalorder %s33, 3
      %p359 = pnand %p357, %p358
      %p360 = pneg %p359
      // Predicated region
      $region9: #{tpu_custom_call.1} parent=5 // pred_check
        _
      $region10: #{tpu_custom_call.1} parent=5 // pred_check_branch
        %362 = sbr.rel (%p359) target = $region12
      $region11: #{tpu_custom_call.1} parent=5 // pred_region
        %s363 = ssub.s32 %s33, 1
        // Predicated region
        $region13: #{tpu_custom_call.1} parent=11 // pred_check
          %p364 = pneg %p146
        $region14: #{tpu_custom_call.1} parent=11 // pred_check_branch
          %366 = sbr.rel (%p364) target = $region16
        $region15: #{tpu_custom_call.1} parent=11 // pred_region
          %368 = vsyncadd [#allocation12], 0
          %s369 = sshll.u32 %s3, 4
          %s370 = int_to_ptr.hbm [resolvable:$true] %s369
          %s371 = sshll.u32 [#allocation11], 4
          %s372 = int_to_ptr.vmem [resolvable:$true] %s371
          %377 = dma.hbm_to_vmem [thread:$0]  %s370, 512, %s372, [#allocation12], 128, 128, 8
        $region16: #{tpu_custom_call.1} parent=11 // pred_fallthru
          _
        // Predicated region
        $region17: #{tpu_custom_call.1} parent=11 // pred_check
          %p378 = pneg %p167
        $region18: #{tpu_custom_call.1} parent=11 // pred_check_branch
          %380 = sbr.rel (%p378) target = $region20
        $region19: #{tpu_custom_call.1} parent=11 // pred_region
          _
        $region20: #{tpu_custom_call.1} parent=11 // pred_fallthru
          _
        // Predicated region
        $region21: #{tpu_custom_call.1} parent=11 // pred_check
          %p381 = pneg %p188
        $region22: #{tpu_custom_call.1} parent=11 // pred_check_branch
          %383 = sbr.rel (%p381) target = $region24
        $region23: #{tpu_custom_call.1} parent=11 // pred_region
          %385 = vsyncadd [#allocation12], 0
          %s386 = sshll.u32 %s5, 4
          %s387 = int_to_ptr.hbm [resolvable:$true] %s386
          %s388 = sshll.u32 [#allocation13], 4
          %s389 = int_to_ptr.vmem [resolvable:$true] %s388
          %394 = dma.hbm_to_vmem [thread:$0]  %s387, 512, %s389, [#allocation12], 128, 128, 8
        $region24: #{tpu_custom_call.1} parent=11 // pred_fallthru
          _
        // Predicated region
        $region25: #{tpu_custom_call.1} parent=11 // pred_check
          %p395 = pneg %p209
        $region26: #{tpu_custom_call.1} parent=11 // pred_check_branch
          %397 = sbr.rel (%p395) target = $region28
        $region27: #{tpu_custom_call.1} parent=11 // pred_region
          _
        $region28: #{tpu_custom_call.1} parent=11 // pred_fallthru
          _
        // Predicated region
        $region29: #{tpu_custom_call.1} parent=11 // pred_check
          %p398 = pneg %p230
        $region30: #{tpu_custom_call.1} parent=11 // pred_check_branch
          %400 = sbr.rel (%p398) target = $region32
        $region31: #{tpu_custom_call.1} parent=11 // pred_region
          %402 = vsyncadd [#allocation15], 0
          %s403 = sshll.u32 %s7, 4
          %s404 = int_to_ptr.hbm [resolvable:$true] %s403
          %s405 = sshll.u32 [#allocation14], 4
          %s406 = int_to_ptr.vmem [resolvable:$true] %s405
          %411 = dma.hbm_to_vmem [thread:$0]  %s404, 512, %s406, [#allocation15], 128, 128, 8
        $region32: #{tpu_custom_call.1} parent=11 // pred_fallthru
          _
        // Predicated region
        $region33: #{tpu_custom_call.1} parent=11 // pred_check
          %p412 = pneg %p251
        $region34: #{tpu_custom_call.1} parent=11 // pred_check_branch
          %414 = sbr.rel (%p412) target = $region36
        $region35: #{tpu_custom_call.1} parent=11 // pred_region
          _
        $region36: #{tpu_custom_call.1} parent=11 // pred_fallthru
          _
        // Predicated region
        $region37: #{tpu_custom_call.1} parent=11 // pred_check
          %p415 = pneg %p272
        $region38: #{tpu_custom_call.1} parent=11 // pred_check_branch
          %417 = sbr.rel (%p415) target = $region40
        $region39: #{tpu_custom_call.1} parent=11 // pred_region
          %419 = vsyncadd [#allocation15], 0
          %s420 = sshll.u32 %s9, 4
          %s421 = int_to_ptr.hbm [resolvable:$true] %s420
          %s422 = sshll.u32 [#allocation16], 4
          %s423 = int_to_ptr.vmem [resolvable:$true] %s422
          %428 = dma.hbm_to_vmem [thread:$0]  %s421, 512, %s423, [#allocation15], 128, 128, 8
        $region40: #{tpu_custom_call.1} parent=11 // pred_fallthru
          _
        // Predicated region
        $region41: #{tpu_custom_call.1} parent=11 // pred_check
          %p429 = pneg %p293
        $region42: #{tpu_custom_call.1} parent=11 // pred_check_branch
          %431 = sbr.rel (%p429) target = $region44
        $region43: #{tpu_custom_call.1} parent=11 // pred_region
          _
        $region44: #{tpu_custom_call.1} parent=11 // pred_fallthru
          _
      $region12: #{tpu_custom_call.1} parent=5 // pred_fallthru
        _
      %p432 = scmp.lt.s32.totalorder %s33, 2
      // Predicated region
      $region45: #{tpu_custom_call.1} parent=5 // pred_check
        %p433 = pneg %p432
      $region46: #{tpu_custom_call.1} parent=5 // pred_check_branch
        %435 = sbr.rel (%p433) target = $region48
      $region47: #{tpu_custom_call.1} parent=5 // pred_region
        // Predicated region
        $region49: #{tpu_custom_call.1} parent=47 // pred_check
          %p436 = pneg %p67
        $region50: #{tpu_custom_call.1} parent=47 // pred_check_branch
          %438 = sbr.rel (%p436) target = $region52
        $region51: #{tpu_custom_call.1} parent=47 // pred_region
          %s439 = sand.u32 %s57, 1
          %s440 = scalar_lea.sflag [#allocation6], %s439
          %s441 = sand.u32 %s57, 1
          %s442 = smul.addr %s441, 8
          %s443 = scalar_lea.vmem [#allocation5], %s442
          %445 = vsyncadd %s440, 0
          %s446 = sadd.s32 %s41, %s40
          %s447 = smul.addr %s446, 8
          %s448 = scalar_lea.hbm %s0, %s447
          %s450 = sshll.u32 %s448, 4
          %s451 = int_to_ptr.hbm [resolvable:$true] %s450
          %s452 = sshll.u32 %s443, 4
          %s453 = int_to_ptr.vmem [resolvable:$true] %s452
          %455 = dma.hbm_to_vmem [thread:$0]  %s451, 128, %s453, %s440
        $region52: #{tpu_custom_call.1} parent=47 // pred_fallthru
          _
        // Predicated region
        $region53: #{tpu_custom_call.1} parent=47 // pred_check
          %p456 = pneg %p93
        $region54: #{tpu_custom_call.1} parent=47 // pred_check_branch
          %458 = sbr.rel (%p456) target = $region56
        $region55: #{tpu_custom_call.1} parent=47 // pred_region
          %s459 = sand.u32 %s33, 1
          %s460 = scalar_lea.sflag [#allocation9], %s459
          %s461 = sand.u32 %s83, 1
          %s462 = smul.addr %s461, 8
          %s463 = scalar_lea.vmem [#allocation8], %s462
          %465 = vsyncadd %s460, 0
          %s466 = smul.addr %s40, 8
          %s467 = scalar_lea.hbm %s1, %s466
          %s469 = sshll.u32 %s467, 4
          %s470 = int_to_ptr.hbm [resolvable:$true] %s469
          %s471 = sshll.u32 %s463, 4
          %s472 = int_to_ptr.vmem [resolvable:$true] %s471
          %474 = dma.hbm_to_vmem [thread:$0]  %s470, 128, %s472, %s460
        $region56: #{tpu_custom_call.1} parent=47 // pred_fallthru
          _
        // Predicated region
        $region57: #{tpu_custom_call.1} parent=47 // pred_check
          %p475 = pneg %p119
        $region58: #{tpu_custom_call.1} parent=47 // pred_check_branch
          %477 = sbr.rel (%p475) target = $region60
        $region59: #{tpu_custom_call.1} parent=47 // pred_region
          %s478 = sand.u32 %s33, 1
          %s479 = scalar_lea.sflag [#allocation9], %s478
          %s480 = sand.u32 %s109, 1
          %s481 = smul.addr %s480, 8
          %s482 = scalar_lea.vmem [#allocation10], %s481
          %484 = vsyncadd %s479, 0
          %s485 = smul.addr %s40, 8
          %s486 = scalar_lea.hbm %s2, %s485
          %s488 = sshll.u32 %s486, 4
          %s489 = int_to_ptr.hbm [resolvable:$true] %s488
          %s490 = sshll.u32 %s482, 4
          %s491 = int_to_ptr.vmem [resolvable:$true] %s490
          %493 = dma.hbm_to_vmem [thread:$0]  %s489, 128, %s491, %s479
        $region60: #{tpu_custom_call.1} parent=47 // pred_fallthru
          _
      $region48: #{tpu_custom_call.1} parent=5 // pred_fallthru
        _
      %p494 = scmp.le.s32.totalorder 1, %s33
      %p495 = scmp.lt.s32.totalorder %s33, 3
      %p496 = pnand %p494, %p495
      %p497 = pneg %p496
      // Predicated region
      $region61: #{tpu_custom_call.1} parent=5 // pred_check
        _
      $region62: #{tpu_custom_call.1} parent=5 // pred_check_branch
        %499 = sbr.rel (%p496) target = $region64
      $region63: #{tpu_custom_call.1} parent=5 // pred_region
        %s500 = ssub.s32 %s33, 1
        %s501 = sand.u32 %s60, 1
        %s502 = scalar_lea.sflag [#allocation6], %s501
        %s503 = sand.u32 %s60, 1
        %s504 = smul.addr %s503, 8
        %s505 = scalar_lea.vmem [#allocation5], %s504
        // Predicated region
        $region65: #{tpu_custom_call.1} parent=63 // pred_check
          %p506 = pneg %p73
        $region66: #{tpu_custom_call.1} parent=63 // pred_check_branch
          %508 = sbr.rel (%p506) target = $region68
        $region67: #{tpu_custom_call.1} parent=63 // pred_region
          %510 = dma.done %s502, 128
        $region68: #{tpu_custom_call.1} parent=63 // pred_fallthru
          _
        %s511 = sand.u32 %s38, 1
        %s512 = scalar_lea.sflag [#allocation9], %s511
        %s513 = sand.u32 %s86, 1
        %s514 = smul.addr %s513, 8
        %s515 = scalar_lea.vmem [#allocation8], %s514
        // Predicated region
        $region69: #{tpu_custom_call.1} parent=63 // pred_check
          %p516 = pneg %p99
        $region70: #{tpu_custom_call.1} parent=63 // pred_check_branch
          %518 = sbr.rel (%p516) target = $region72
        $region71: #{tpu_custom_call.1} parent=63 // pred_region
          %520 = dma.done %s512, 128
        $region72: #{tpu_custom_call.1} parent=63 // pred_fallthru
          _
        %s521 = sand.u32 %s38, 1
        %s522 = scalar_lea.sflag [#allocation9], %s521
        %s523 = sand.u32 %s112, 1
        %s524 = smul.addr %s523, 8
        %s525 = scalar_lea.vmem [#allocation10], %s524
        // Predicated region
        $region73: #{tpu_custom_call.1} parent=63 // pred_check
          %p526 = pneg %p125
        $region74: #{tpu_custom_call.1} parent=63 // pred_check_branch
          %528 = sbr.rel (%p526) target = $region76
        $region75: #{tpu_custom_call.1} parent=63 // pred_region
          %530 = dma.done %s522, 128
        $region76: #{tpu_custom_call.1} parent=63 // pred_fallthru
          _
        // Predicated region
        $region77: #{tpu_custom_call.1} parent=63 // pred_check
          %p531 = pneg %p146
        $region78: #{tpu_custom_call.1} parent=63 // pred_check_branch
          %533 = sbr.rel (%p531) target = $region80
        $region79: #{tpu_custom_call.1} parent=63 // pred_region
          %535 = dma.done [#allocation12], 512
        $region80: #{tpu_custom_call.1} parent=63 // pred_fallthru
          _
        // Predicated region
        $region81: #{tpu_custom_call.1} parent=63 // pred_check
          %p536 = pneg %p188
        $region82: #{tpu_custom_call.1} parent=63 // pred_check_branch
          %538 = sbr.rel (%p536) target = $region84
        $region83: #{tpu_custom_call.1} parent=63 // pred_region
          %540 = dma.done [#allocation12], 512
        $region84: #{tpu_custom_call.1} parent=63 // pred_fallthru
          _
        // Predicated region
        $region85: #{tpu_custom_call.1} parent=63 // pred_check
          %p541 = pneg %p230
        $region86: #{tpu_custom_call.1} parent=63 // pred_check_branch
          %543 = sbr.rel (%p541) target = $region88
        $region87: #{tpu_custom_call.1} parent=63 // pred_region
          %545 = dma.done [#allocation15], 512
        $region88: #{tpu_custom_call.1} parent=63 // pred_fallthru
          _
        // Predicated region
        $region89: #{tpu_custom_call.1} parent=63 // pred_check
          %p546 = pneg %p272
        $region90: #{tpu_custom_call.1} parent=63 // pred_check_branch
          %548 = sbr.rel (%p546) target = $region92
        $region91: #{tpu_custom_call.1} parent=63 // pred_region
          %550 = dma.done [#allocation15], 512
        $region92: #{tpu_custom_call.1} parent=63 // pred_fallthru
          _
        %s551 = sand.u32 %s60, 1
        %s552 = scalar_lea.sflag [#allocation6], %s551
        %s553 = sand.u32 %s60, 1
        %s554 = smul.addr %s553, 8
        %s555 = scalar_lea.vmem [#allocation5], %s554
        %p556 = pneg %p73
        %p557 = pneg %p70
        %s558 = sand.u32 %s38, 1
        %s559 = scalar_lea.sflag [#allocation9], %s558
        %s560 = sand.u32 %s86, 1
        %s561 = smul.addr %s560, 8
        %s562 = scalar_lea.vmem [#allocation8], %s561
        %p563 = pneg %p99
        %p564 = pneg %p96
        %s565 = sand.u32 %s38, 1
        %s566 = scalar_lea.sflag [#allocation9], %s565
        %s567 = sand.u32 %s112, 1
        %s568 = smul.addr %s567, 8
        %s569 = scalar_lea.vmem [#allocation10], %s568
        %p570 = pneg %p125
        %p571 = pneg %p122
        %p572 = pneg %p146
        %p573 = pneg %p143
        %p574 = pneg %p167
        %p575 = pneg %p164
        %p576 = pneg %p188
        %p577 = pneg %p185
        %p578 = pneg %p209
        %p579 = pneg %p206
        %p580 = pneg %p230
        %p581 = pneg %p227
        %p582 = pneg %p251
        %p583 = pneg %p248
        %p584 = pneg %p272
        %p585 = pneg %p269
        %p586 = pneg %p293
        %p587 = pneg %p290
        %p588 = pneg %p321
        %p589 = pneg %p318
        %s590 = sand.u32 %s308, 1
        %s591 = scalar_lea.sflag [#allocation7], %s590
        %s592 = sand.u32 %s308, 1
        %s593 = smul.addr %s592, 8
        %s594 = scalar_lea.vmem [#allocation17], %s593
        %p595 = pneg %p349
        %p596 = pneg %p346
        %s597 = sand.u32 %s336, 1
        %s598 = scalar_lea.sflag [#allocation19], %s597
        %s599 = sand.u32 %s336, 1
        %s600 = smul.addr %s599, 32
        %s601 = scalar_lea.vmem [#allocation18], %s600
        %p602 = scmp.eq.s32.totalorder %s43, 0
        // Predicated region
        $region93: #{tpu_custom_call.1} parent=63 // pred_check
          %p603 = pneg %p602
        $region94: #{tpu_custom_call.1} parent=63 // pred_check_branch
          %605 = sbr.rel (%p603) target = $region96
        $region95: #{tpu_custom_call.1} parent=63 // pred_region
          %v606 = vld [vmem:[%s515] sm:$0xff]
          %v607 = vld [vmem:[%s525] sm:$0xff]
          %v608 = vld [vmem:[#allocation13] sm:$0xff]
          %v609 = vld [vmem:[#allocation13 + $0x8] sm:$0xff]
          %v610 = vld [vmem:[#allocation13 + $0x10] sm:$0xff]
          %v611 = vld [vmem:[#allocation13 + $0x18] sm:$0xff]
          %v612 = vld [vmem:[%s6] sm:$0x1]
          %v614 = vperm.slane %v612, 0
          %vm616 = vcmask 261120
          %v618 = vsel %vm616, %v606, 0
          %620 = vmatpush.msra.mxu0 0.0
          %621 = vmatpush.msra.mxu0 0.0
          %622 = vmatpush.msra.mxu0 0.0
          %623 = vmatpush.msra.mxu0 0.0
          %624 = vmatpush.msra.mxu0 0.0
          %625 = vmatpush.msra.mxu0 0.0
          %626 = vmatpush.msra.mxu0 0.0
          %627 = vmatpush.msra.mxu0 0.0
          %628 = vmatpush.msra.mxu0 0.0
          %629 = vmatpush.msra.mxu0 0.0
          %630 = vmatpush.msra.mxu0 0.0
          %631 = vmatpush.msra.mxu0 0.0
          %632 = vmatpush.msra.mxu0 %v611
          %633 = vmatpush.msra.mxu0 %v610
          %634 = vmatpush.msra.mxu0 %v609
          %635 = vmatpush.msra.mxu0 %v608
          %636 = vmatmul.f32.gmra.mxu0 %v618
          %v637 = vpop.f32.mrf.mxu0
          %v638 = vadd.f32 %v614, %v637
          %639 = vdwg.mxu0
          %v640 = vld [vmem:[#allocation14] sm:$0xff]
          %v641 = vld [vmem:[#allocation14 + $0x8] sm:$0xff]
          %v642 = vld [vmem:[#allocation14 + $0x10] sm:$0xff]
          %v643 = vld [vmem:[#allocation14 + $0x18] sm:$0xff]
          %v644 = vld [vmem:[%s8] sm:$0x1]
          %v646 = vperm.slane %v644, 0
          %v649 = vsel %vm616, %v607, 0
          %651 = vmatpush.msra.mxu0 0.0
          %652 = vmatpush.msra.mxu0 0.0
          %653 = vmatpush.msra.mxu0 0.0
          %654 = vmatpush.msra.mxu0 0.0
          %655 = vmatpush.msra.mxu0 0.0
          %656 = vmatpush.msra.mxu0 0.0
          %657 = vmatpush.msra.mxu0 0.0
          %658 = vmatpush.msra.mxu0 0.0
          %659 = vmatpush.msra.mxu0 0.0
          %660 = vmatpush.msra.mxu0 0.0
          %661 = vmatpush.msra.mxu0 0.0
          %662 = vmatpush.msra.mxu0 0.0
          %663 = vmatpush.msra.mxu0 %v643
          %664 = vmatpush.msra.mxu0 %v642
          %665 = vmatpush.msra.mxu0 %v641
          %666 = vmatpush.msra.mxu0 %v640
          %667 = vmatmul.f32.gmra.mxu0 %v649
          %v668 = vpop.f32.mrf.mxu0
          %v669 = vadd.f32 %v646, %v668
          %670 = vdwg.mxu0
          %671 = vxpose.xlu0.b32.start [1/16] %v638, 128
          %672 = vxpose.xlu0.b32.cont [2/16] 0.0, 128
          %673 = vxpose.xlu0.b32.cont [3/16] 0.0, 128
          %674 = vxpose.xlu0.b32.cont [4/16] 0.0, 128
          %675 = vxpose.xlu0.b32.cont [5/16] 0.0, 128
          %676 = vxpose.xlu0.b32.cont [6/16] 0.0, 128
          %677 = vxpose.xlu0.b32.cont [7/16] 0.0, 128
          %678 = vxpose.xlu0.b32.cont [8/16] 0.0, 128
          %679 = vxpose.xlu0.b32.cont [9/16] 0.0, 128
          %680 = vxpose.xlu0.b32.cont [10/16] 0.0, 128
          %681 = vxpose.xlu0.b32.cont [11/16] 0.0, 128
          %682 = vxpose.xlu0.b32.cont [12/16] 0.0, 128
          %683 = vxpose.xlu0.b32.cont [13/16] 0.0, 128
          %684 = vxpose.xlu0.b32.cont [14/16] 0.0, 128
          %685 = vxpose.xlu0.b32.cont [15/16] 0.0, 128
          %686 = vxpose.xlu0.b32.end [16/16] 0.0, 128
          %v687 = vpop.trf.xlu0
          %v688 = vpop.trf.xlu0
          %v689 = vpop.trf.xlu0
          %v690 = vpop.trf.xlu0
          %v691 = vpop.trf.xlu0
          %v692 = vpop.trf.xlu0
          %v693 = vpop.trf.xlu0
          %v694 = vpop.trf.xlu0
          %v695 = vpop.trf.xlu0
          %v696 = vpop.trf.xlu0
          %v697 = vpop.trf.xlu0
          %v698 = vpop.trf.xlu0
          %v699 = vpop.trf.xlu0
          %v700 = vpop.trf.xlu0
          %v701 = vpop.trf.xlu0
          %v702 = vpop.trf.xlu0
          %vm703 = vcmask 64512
          %704 = vst.msk [vmem:[#allocation2] sm:$0xff] %vm703, %v687
          %705 = vst.msk [vmem:[#allocation2 + $0x8] sm:$0xff] %vm703, %v688
          %706 = vst.msk [vmem:[#allocation2 + $0x10] sm:$0xff] %vm703, %v689
          %707 = vst.msk [vmem:[#allocation2 + $0x18] sm:$0xff] %vm703, %v690
          %708 = vst.msk [vmem:[#allocation3] sm:$0xff] %vm616, %v669
        $region96: #{tpu_custom_call.1} parent=63 // pred_fallthru
          _
        %v709 = vld [vmem:[%s505] sm:$0xff]
        %v710 = vld [vmem:[#allocation11] sm:$0xff]
        %v711 = vld [vmem:[#allocation11 + $0x8] sm:$0xff]
        %v712 = vld [vmem:[#allocation11 + $0x10] sm:$0xff]
        %v713 = vld [vmem:[#allocation11 + $0x18] sm:$0xff]
        %v714 = vld [vmem:[%s4] sm:$0x1]
        %v716 = vperm.slane %v714, 0
        %vm718 = vcmask 261120
        %v720 = vsel %vm718, %v709, 0
        %722 = vmatpush.msra.mxu0 0.0
        %723 = vmatpush.msra.mxu0 0.0
        %724 = vmatpush.msra.mxu0 0.0
        %725 = vmatpush.msra.mxu0 0.0
        %726 = vmatpush.msra.mxu0 0.0
        %727 = vmatpush.msra.mxu0 0.0
        %728 = vmatpush.msra.mxu0 0.0
        %729 = vmatpush.msra.mxu0 0.0
        %730 = vmatpush.msra.mxu0 0.0
        %731 = vmatpush.msra.mxu0 0.0
        %732 = vmatpush.msra.mxu0 0.0
        %733 = vmatpush.msra.mxu0 0.0
        %734 = vmatpush.msra.mxu0 %v713
        %735 = vmatpush.msra.mxu0 %v712
        %736 = vmatpush.msra.mxu0 %v711
        %737 = vmatpush.msra.mxu0 %v710
        %738 = vmatmul.f32.gmra.mxu0 %v720
        %v739 = vpop.f32.mrf.mxu0
        %v740 = vadd.f32 %v716, %v739
        %741 = vdwg.mxu0
        %v742 = vmul.f32 %v740, 0.35355338
        %v743 = vld [vmem:[#allocation2] sm:$0xff]
        %v744 = vld [vmem:[#allocation3] sm:$0xff]
        %vm745 = vcmask 64512
        %v747 = vsel %vm745, %v742, 0
        %749 = vmatpush.msra.mxu0 0.0
        %750 = vmatpush.msra.mxu0 0.0
        %751 = vmatpush.msra.mxu0 0.0
        %752 = vmatpush.msra.mxu0 0.0
        %753 = vmatpush.msra.mxu0 0.0
        %754 = vmatpush.msra.mxu0 0.0
        %755 = vmatpush.msra.mxu0 0.0
        %756 = vmatpush.msra.mxu0 0.0
        %757 = vmatpush.msra.mxu0 0.0
        %758 = vmatpush.msra.mxu0 0.0
        %759 = vmatpush.msra.mxu0 0.0
        %760 = vmatpush.msra.mxu0 0.0
        %761 = vmatpush.msra.mxu0 0.0
        %762 = vmatpush.msra.mxu0 0.0
        %763 = vmatpush.msra.mxu0 0.0
        %764 = vmatpush.msra.mxu0 %v743
        %765 = vmatmul.f32.gmra.mxu0 %v747
        %v766 = vpop.f32.mrf.mxu0
        %v767 = vadd.f32 0.0, %v766
        %768 = vdwg.mxu0
        %v769 = vsel %vm745, %v767, -inf
        %770 = vmax.xlane.f32.xlu0 %v769
        %v771 = vpop.xlane.xlu0 %770
        %v772 = vsub.f32 %v767, %v771
        %v773 = vmul.f32 %v772, 1.442695
        %v774 = vpow.pop %v773
        %v775 = vsel %vm745, %v774, 0.0
        %776 = vadd.xlane.f32.xlu0 %v775
        %v777 = vpop.xlane.xlu0 %776
        %v778 = vrcp.pop %v777
        %v779 = vmul.f32 %v777, %v778
        %v780 = vsub.f32 1.0, %v779
        %v781 = vmul.f32 %v778, %v780
        %v782 = vadd.f32 %v778, %v781
        %vm783 = vweird.f32 %v777
        %vm784 = vweird.f32 %v778
        %vm785 = vmor %vm783, %vm784
        %v786 = vsel %vm785, %v778, %v782
        %v787 = vand.u32 2147483647, %v777
        %vm788 = vcmp.eq.f32.partialorder %v787, 8.507059e+37
        %v789 = vand.u32 %v777, 2147483648
        %v790 = vor.u32 1.1754944e-38, %v789
        %v791 = vsel %vm788, %v790, %v786
        %v792 = vmul.f32 %v774, %v791
        %793 = vst.msk [vmem:[%s601] sm:$0xff] %vm745, %v792
        %v795 = vsel %vm745, %v792, 0
        %797 = vmatpush.msra.mxu0 0.0
        %798 = vmatpush.msra.mxu0 0.0
        %799 = vmatpush.msra.mxu0 0.0
        %800 = vmatpush.msra.mxu0 0.0
        %801 = vmatpush.msra.mxu0 0.0
        %802 = vmatpush.msra.mxu0 0.0
        %803 = vmatpush.msra.mxu0 0.0
        %804 = vmatpush.msra.mxu0 0.0
        %805 = vmatpush.msra.mxu0 0.0
        %806 = vmatpush.msra.mxu0 0.0
        %807 = vmatpush.msra.mxu0 0.0
        %808 = vmatpush.msra.mxu0 0.0
        %809 = vmatpush.msra.mxu0 0.0
        %810 = vmatpush.msra.mxu0 0.0
        %811 = vmatpush.msra.mxu0 0.0
        %812 = vmatpush.msra.mxu0 %v744
        %813 = vmatmul.f32.gmra.mxu0 %v795
        %v814 = vpop.f32.mrf.mxu0
        %v815 = vadd.f32 0.0, %v814
        %816 = vdwg.mxu0
        %817 = vst.msk [vmem:[#allocation4] sm:$0xff] %vm745, %v815
        %v818 = vld [vmem:[#allocation2 + $0x8] sm:$0xff]
        %v819 = vld [vmem:[#allocation3] sm:$0xff]
        %820 = vrot.lane.b32.xlu0 %v742, 120
        %v821 = vpop.permute.xlu0 %820
        %v822 = vsel %vm745, %v821, 0
        %824 = vmatpush.msra.mxu0 0.0
        %825 = vmatpush.msra.mxu0 0.0
        %826 = vmatpush.msra.mxu0 0.0
        %827 = vmatpush.msra.mxu0 0.0
        %828 = vmatpush.msra.mxu0 0.0
        %829 = vmatpush.msra.mxu0 0.0
        %830 = vmatpush.msra.mxu0 0.0
        %831 = vmatpush.msra.mxu0 0.0
        %832 = vmatpush.msra.mxu0 0.0
        %833 = vmatpush.msra.mxu0 0.0
        %834 = vmatpush.msra.mxu0 0.0
        %835 = vmatpush.msra.mxu0 0.0
        %836 = vmatpush.msra.mxu0 0.0
        %837 = vmatpush.msra.mxu0 0.0
        %838 = vmatpush.msra.mxu0 0.0
        %839 = vmatpush.msra.mxu0 %v818
        %840 = vmatmul.f32.gmra.mxu0 %v822
        %v841 = vpop.f32.mrf.mxu0
        %v842 = vadd.f32 0.0, %v841
        %843 = vdwg.mxu0
        %v844 = vsel %vm745, %v842, -inf
        %845 = vmax.xlane.f32.xlu0 %v844
        %v846 = vpop.xlane.xlu0 %845
        %v847 = vsub.f32 %v842, %v846
        %v848 = vmul.f32 %v847, 1.442695
        %v849 = vpow.pop %v848
        %v850 = vsel %vm745, %v849, 0.0
        %851 = vadd.xlane.f32.xlu0 %v850
        %v852 = vpop.xlane.xlu0 %851
        %v853 = vrcp.pop %v852
        %v854 = vmul.f32 %v852, %v853
        %v855 = vsub.f32 1.0, %v854
        %v856 = vmul.f32 %v853, %v855
        %v857 = vadd.f32 %v853, %v856
        %vm858 = vweird.f32 %v852
        %vm859 = vweird.f32 %v853
        %vm860 = vmor %vm858, %vm859
        %v861 = vsel %vm860, %v853, %v857
        %v862 = vand.u32 2147483647, %v852
        %vm863 = vcmp.eq.f32.partialorder %v862, 8.507059e+37
        %v864 = vand.u32 %v852, 2147483648
        %v865 = vor.u32 1.1754944e-38, %v864
        %v866 = vsel %vm863, %v865, %v861
        %v867 = vmul.f32 %v849, %v866
        %s868 = scalar_lea.vmem %s601, 8 [#allocation18]
        %869 = vst.msk [vmem:[%s868] sm:$0xff] %vm745, %v867
        %871 = vrot.lane.b32.xlu0 %v819, 120
        %v872 = vpop.permute.xlu0 %871
        %v875 = vsel %vm745, %v867, 0
        %877 = vmatpush.msra.mxu0 0.0
        %878 = vmatpush.msra.mxu0 0.0
        %879 = vmatpush.msra.mxu0 0.0
        %880 = vmatpush.msra.mxu0 0.0
        %881 = vmatpush.msra.mxu0 0.0
        %882 = vmatpush.msra.mxu0 0.0
        %883 = vmatpush.msra.mxu0 0.0
        %884 = vmatpush.msra.mxu0 0.0
        %885 = vmatpush.msra.mxu0 0.0
        %886 = vmatpush.msra.mxu0 0.0
        %887 = vmatpush.msra.mxu0 0.0
        %888 = vmatpush.msra.mxu0 0.0
        %889 = vmatpush.msra.mxu0 0.0
        %890 = vmatpush.msra.mxu0 0.0
        %891 = vmatpush.msra.mxu0 0.0
        %892 = vmatpush.msra.mxu0 %v872
        %893 = vmatmul.f32.gmra.mxu0 %v875
        %v894 = vpop.f32.mrf.mxu0
        %v895 = vadd.f32 0.0, %v894
        %896 = vdwg.mxu0
        %898 = vrot.lane.b32.xlu0 %v895, 8
        %v899 = vpop.permute.xlu0 %898
        %vm901 = vcmask 130112
        %902 = vst.msk [vmem:[#allocation4] sm:$0xff] %vm901, %v899
        %v903 = vld [vmem:[#allocation2 + $0x10] sm:$0xff]
        %v904 = vld [vmem:[#allocation3] sm:$0xff]
        %905 = vrot.lane.b32.xlu0 %v742, 112
        %v906 = vpop.permute.xlu0 %905
        %v907 = vsel %vm745, %v906, 0
        %909 = vmatpush.msra.mxu0 0.0
        %910 = vmatpush.msra.mxu0 0.0
        %911 = vmatpush.msra.mxu0 0.0
        %912 = vmatpush.msra.mxu0 0.0
        %913 = vmatpush.msra.mxu0 0.0
        %914 = vmatpush.msra.mxu0 0.0
        %915 = vmatpush.msra.mxu0 0.0
        %916 = vmatpush.msra.mxu0 0.0
        %917 = vmatpush.msra.mxu0 0.0
        %918 = vmatpush.msra.mxu0 0.0
        %919 = vmatpush.msra.mxu0 0.0
        %920 = vmatpush.msra.mxu0 0.0
        %921 = vmatpush.msra.mxu0 0.0
        %922 = vmatpush.msra.mxu0 0.0
        %923 = vmatpush.msra.mxu0 0.0
        %924 = vmatpush.msra.mxu0 %v903
        %925 = vmatmul.f32.gmra.mxu0 %v907
        %v926 = vpop.f32.mrf.mxu0
        %v927 = vadd.f32 0.0, %v926
        %928 = vdwg.mxu0
        %v929 = vsel %vm745, %v927, -inf
        %930 = vmax.xlane.f32.xlu0 %v929
        %v931 = vpop.xlane.xlu0 %930
        %v932 = vsub.f32 %v927, %v931
        %v933 = vmul.f32 %v932, 1.442695
        %v934 = vpow.pop %v933
        %v935 = vsel %vm745, %v934, 0.0
        %936 = vadd.xlane.f32.xlu0 %v935
        %v937 = vpop.xlane.xlu0 %936
        %v938 = vrcp.pop %v937
        %v939 = vmul.f32 %v937, %v938
        %v940 = vsub.f32 1.0, %v939
        %v941 = vmul.f32 %v938, %v940
        %v942 = vadd.f32 %v938, %v941
        %vm943 = vweird.f32 %v937
        %vm944 = vweird.f32 %v938
        %vm945 = vmor %vm943, %vm944
        %v946 = vsel %vm945, %v938, %v942
        %v947 = vand.u32 2147483647, %v937
        %vm948 = vcmp.eq.f32.partialorder %v947, 8.507059e+37
        %v949 = vand.u32 %v937, 2147483648
        %v950 = vor.u32 1.1754944e-38, %v949
        %v951 = vsel %vm948, %v950, %v946
        %v952 = vmul.f32 %v934, %v951
        %s953 = scalar_lea.vmem %s601, 16 [#allocation18]
        %954 = vst.msk [vmem:[%s953] sm:$0xff] %vm745, %v952
        %956 = vrot.lane.b32.xlu0 %v904, 112
        %v957 = vpop.permute.xlu0 %956
        %v960 = vsel %vm745, %v952, 0
        %962 = vmatpush.msra.mxu0 0.0
        %963 = vmatpush.msra.mxu0 0.0
        %964 = vmatpush.msra.mxu0 0.0
        %965 = vmatpush.msra.mxu0 0.0
        %966 = vmatpush.msra.mxu0 0.0
        %967 = vmatpush.msra.mxu0 0.0
        %968 = vmatpush.msra.mxu0 0.0
        %969 = vmatpush.msra.mxu0 0.0
        %970 = vmatpush.msra.mxu0 0.0
        %971 = vmatpush.msra.mxu0 0.0
        %972 = vmatpush.msra.mxu0 0.0
        %973 = vmatpush.msra.mxu0 0.0
        %974 = vmatpush.msra.mxu0 0.0
        %975 = vmatpush.msra.mxu0 0.0
        %976 = vmatpush.msra.mxu0 0.0
        %977 = vmatpush.msra.mxu0 %v957
        %978 = vmatmul.f32.gmra.mxu0 %v960
        %v979 = vpop.f32.mrf.mxu0
        %v980 = vadd.f32 0.0, %v979
        %981 = vdwg.mxu0
        %983 = vrot.lane.b32.xlu0 %v980, 16
        %v984 = vpop.permute.xlu0 %983
        %vm986 = vcmask 195712
        %987 = vst.msk [vmem:[#allocation4] sm:$0xff] %vm986, %v984
        %v988 = vld [vmem:[#allocation2 + $0x18] sm:$0xff]
        %v989 = vld [vmem:[#allocation3] sm:$0xff]
        %990 = vrot.lane.b32.xlu0 %v742, 104
        %v991 = vpop.permute.xlu0 %990
        %v992 = vsel %vm745, %v991, 0
        %994 = vmatpush.msra.mxu0 0.0
        %995 = vmatpush.msra.mxu0 0.0
        %996 = vmatpush.msra.mxu0 0.0
        %997 = vmatpush.msra.mxu0 0.0
        %998 = vmatpush.msra.mxu0 0.0
        %999 = vmatpush.msra.mxu0 0.0
        %1000 = vmatpush.msra.mxu0 0.0
        %1001 = vmatpush.msra.mxu0 0.0
        %1002 = vmatpush.msra.mxu0 0.0
        %1003 = vmatpush.msra.mxu0 0.0
        %1004 = vmatpush.msra.mxu0 0.0
        %1005 = vmatpush.msra.mxu0 0.0
        %1006 = vmatpush.msra.mxu0 0.0
        %1007 = vmatpush.msra.mxu0 0.0
        %1008 = vmatpush.msra.mxu0 0.0
        %1009 = vmatpush.msra.mxu0 %v988
        %1010 = vmatmul.f32.gmra.mxu0 %v992
        %v1011 = vpop.f32.mrf.mxu0
        %v1012 = vadd.f32 0.0, %v1011
        %1013 = vdwg.mxu0
        %v1014 = vsel %vm745, %v1012, -inf
        %1015 = vmax.xlane.f32.xlu0 %v1014
        %v1016 = vpop.xlane.xlu0 %1015
        %v1017 = vsub.f32 %v1012, %v1016
        %v1018 = vmul.f32 %v1017, 1.442695
        %v1019 = vpow.pop %v1018
        %v1020 = vsel %vm745, %v1019, 0.0
        %1021 = vadd.xlane.f32.xlu0 %v1020
        %v1022 = vpop.xlane.xlu0 %1021
        %v1023 = vrcp.pop %v1022
        %v1024 = vmul.f32 %v1022, %v1023
        %v1025 = vsub.f32 1.0, %v1024
        %v1026 = vmul.f32 %v1023, %v1025
        %v1027 = vadd.f32 %v1023, %v1026
        %vm1028 = vweird.f32 %v1022
        %vm1029 = vweird.f32 %v1023
        %vm1030 = vmor %vm1028, %vm1029
        %v1031 = vsel %vm1030, %v1023, %v1027
        %v1032 = vand.u32 2147483647, %v1022
        %vm1033 = vcmp.eq.f32.partialorder %v1032, 8.507059e+37
        %v1034 = vand.u32 %v1022, 2147483648
        %v1035 = vor.u32 1.1754944e-38, %v1034
        %v1036 = vsel %vm1033, %v1035, %v1031
        %v1037 = vmul.f32 %v1019, %v1036
        %s1038 = scalar_lea.vmem %s601, 24 [#allocation18]
        %1039 = vst.msk [vmem:[%s1038] sm:$0xff] %vm745, %v1037
        %1041 = vrot.lane.b32.xlu0 %v989, 104
        %v1042 = vpop.permute.xlu0 %1041
        %v1045 = vsel %vm745, %v1037, 0
        %1047 = vmatpush.msra.mxu0 0.0
        %1048 = vmatpush.msra.mxu0 0.0
        %1049 = vmatpush.msra.mxu0 0.0
        %1050 = vmatpush.msra.mxu0 0.0
        %1051 = vmatpush.msra.mxu0 0.0
        %1052 = vmatpush.msra.mxu0 0.0
        %1053 = vmatpush.msra.mxu0 0.0
        %1054 = vmatpush.msra.mxu0 0.0
        %1055 = vmatpush.msra.mxu0 0.0
        %1056 = vmatpush.msra.mxu0 0.0
        %1057 = vmatpush.msra.mxu0 0.0
        %1058 = vmatpush.msra.mxu0 0.0
        %1059 = vmatpush.msra.mxu0 0.0
        %1060 = vmatpush.msra.mxu0 0.0
        %1061 = vmatpush.msra.mxu0 0.0
        %1062 = vmatpush.msra.mxu0 %v1042
        %1063 = vmatmul.f32.gmra.mxu0 %v1045
        %v1064 = vpop.f32.mrf.mxu0
        %v1065 = vadd.f32 0.0, %v1064
        %1066 = vdwg.mxu0
        %1068 = vrot.lane.b32.xlu0 %v1065, 24
        %v1069 = vpop.permute.xlu0 %1068
        %vm1071 = vcmask 261312
        %1072 = vst.msk [vmem:[#allocation4] sm:$0xff] %vm1071, %v1069
        %v1073 = vld [vmem:[#allocation4] sm:$0xff]
        %v1074 = vld [vmem:[#allocation16] sm:$0xff]
        %v1075 = vld [vmem:[#allocation16 + $0x8] sm:$0xff]
        %v1076 = vld [vmem:[#allocation16 + $0x10] sm:$0xff]
        %v1077 = vld [vmem:[#allocation16 + $0x18] sm:$0xff]
        %v1078 = vld [vmem:[%s10] sm:$0x1]
        %v1080 = vperm.slane %v1078, 0
        %v1083 = vsel %vm718, %v1073, 0
        %1085 = vmatpush.msra.mxu0 0.0
        %1086 = vmatpush.msra.mxu0 0.0
        %1087 = vmatpush.msra.mxu0 0.0
        %1088 = vmatpush.msra.mxu0 0.0
        %1089 = vmatpush.msra.mxu0 0.0
        %1090 = vmatpush.msra.mxu0 0.0
        %1091 = vmatpush.msra.mxu0 0.0
        %1092 = vmatpush.msra.mxu0 0.0
        %1093 = vmatpush.msra.mxu0 0.0
        %1094 = vmatpush.msra.mxu0 0.0
        %1095 = vmatpush.msra.mxu0 0.0
        %1096 = vmatpush.msra.mxu0 0.0
        %1097 = vmatpush.msra.mxu0 %v1077
        %1098 = vmatpush.msra.mxu0 %v1076
        %1099 = vmatpush.msra.mxu0 %v1075
        %1100 = vmatpush.msra.mxu0 %v1074
        %1101 = vmatmul.f32.gmra.mxu0 %v1083
        %v1102 = vpop.f32.mrf.mxu0
        %v1103 = vadd.f32 %v1080, %v1102
        %1104 = vdwg.mxu0
        %1105 = vst.msk [vmem:[%s594] sm:$0xff] %vm718, %v1103
        %s1106 = sand.u32 %s308, 1
        %s1107 = scalar_lea.sflag [#allocation7], %s1106
        %s1108 = sand.u32 %s308, 1
        %s1109 = smul.addr %s1108, 8
        %s1110 = scalar_lea.vmem [#allocation17], %s1109
        %s1111 = sand.u32 %s336, 1
        %s1112 = scalar_lea.sflag [#allocation19], %s1111
        %s1113 = sand.u32 %s336, 1
        %s1114 = smul.addr %s1113, 32
        %s1115 = scalar_lea.vmem [#allocation18], %s1114
        // Predicated region
        $region97: #{tpu_custom_call.1} parent=63 // pred_check
          %p1116 = pneg %p318
        $region98: #{tpu_custom_call.1} parent=63 // pred_check_branch
          %1118 = sbr.rel (%p1116) target = $region100
        $region99: #{tpu_custom_call.1} parent=63 // pred_region
          %1120 = vsyncadd %s1107, 0
          %s1121 = sadd.s32 %s43, %s42
          %s1122 = smul.addr %s1121, 8
          %s1123 = scalar_lea.hbm %s11, %s1122
          %s1125 = sshll.u32 %s1110, 4
          %s1126 = int_to_ptr.vmem [resolvable:$true] %s1125
          %s1127 = sshll.u32 %s1123, 4
          %s1128 = int_to_ptr.hbm [resolvable:$true] %s1127
          %1130 = dma.vmem_to_hbm [thread:$0]  %s1126, 128, %s1128, %s1107
        $region100: #{tpu_custom_call.1} parent=63 // pred_fallthru
          _
        // Predicated region
        $region101: #{tpu_custom_call.1} parent=63 // pred_check
          %p1131 = pneg %p346
        $region102: #{tpu_custom_call.1} parent=63 // pred_check_branch
          %1133 = sbr.rel (%p1131) target = $region104
        $region103: #{tpu_custom_call.1} parent=63 // pred_region
          %1135 = vsyncadd %s1112, 0
          %s1136 = smul.addr %s42, 4
          %s1137 = sadd.s32 %s43, %s1136
          %s1138 = smul.addr %s1137, 8
          %s1139 = scalar_lea.hbm %s12, %s1138
          %s1140 = sshll.u32 %s1115, 4
          %s1141 = int_to_ptr.vmem [resolvable:$true] %s1140
          %s1142 = sshll.u32 %s1139, 4
          %s1143 = int_to_ptr.hbm [resolvable:$true] %s1142
          %1148 = dma.vmem_to_hbm [thread:$0]  %s1141, 512, %s1143, %s1112, 128, 128, 8
        $region104: #{tpu_custom_call.1} parent=63 // pred_fallthru
          _
      $region64: #{tpu_custom_call.1} parent=5 // pred_fallthru
        _
      %p1149 = scmp.le.s32.totalorder 2, %s33
      // Predicated region
      $region105: #{tpu_custom_call.1} parent=5 // pred_check
        %p1150 = pneg %p1149
      $region106: #{tpu_custom_call.1} parent=5 // pred_check_branch
        %1152 = sbr.rel (%p1150) target = $region108
      $region107: #{tpu_custom_call.1} parent=5 // pred_region
        %s1153 = ssub.s32 %s33, 2
        // Predicated region
        $region109: #{tpu_custom_call.1} parent=107 // pred_check
          %p1154 = pneg %p324
        $region110: #{tpu_custom_call.1} parent=107 // pred_check_branch
          %1156 = sbr.rel (%p1154) target = $region112
        $region111: #{tpu_custom_call.1} parent=107 // pred_region
          %s1157 = sand.u32 %s309, 1
          %s1158 = scalar_lea.sflag [#allocation7], %s1157
          %s1159 = sand.u32 %s309, 1
          %s1160 = smul.addr %s1159, 8
          %s1161 = scalar_lea.vmem [#allocation17], %s1160
          %1163 = dma.done %s1158, 128
        $region112: #{tpu_custom_call.1} parent=107 // pred_fallthru
          _
        // Predicated region
        $region113: #{tpu_custom_call.1} parent=107 // pred_check
          %p1164 = pneg %p352
        $region114: #{tpu_custom_call.1} parent=107 // pred_check_branch
          %1166 = sbr.rel (%p1164) target = $region116
        $region115: #{tpu_custom_call.1} parent=107 // pred_region
          %s1167 = sand.u32 %s337, 1
          %s1168 = scalar_lea.sflag [#allocation19], %s1167
          %s1169 = sand.u32 %s337, 1
          %s1170 = smul.addr %s1169, 32
          %s1171 = scalar_lea.vmem [#allocation18], %s1170
          %1173 = dma.done %s1168, 512
        $region116: #{tpu_custom_call.1} parent=107 // pred_fallthru
          _
      $region108: #{tpu_custom_call.1} parent=5 // pred_fallthru
        _
    $region6: #{tpu_custom_call.1} parent=1 // loop_footer
      %s37 = sadd.s32 1, %s33
    $region7: #{tpu_custom_call.1} parent=1 // loop_footer_branch
      %32 = sbr.rel target = $region3
    $region8: #{tpu_custom_call.1} parent=1 // loop_exit
      _
    %1174 = vsyncpa [#allocation6], 1
    %s1175 = scalar_lea.sflag [#allocation6], 1
    %1176 = vsyncpa %s1175, 1
    %1177 = vsyncpa [#allocation9], 1
    %s1178 = scalar_lea.sflag [#allocation9], 1
    %1179 = vsyncpa %s1178, 1
    %1180 = vsyncpa [#allocation12], 1
    %1181 = vsyncpa [#allocation15], 1
    %1182 = vsyncpa [#allocation7], 1
    %s1183 = scalar_lea.sflag [#allocation7], 1
    %1184 = vsyncpa %s1183, 1
    %1185 = vsyncpa [#allocation19], 1
    %s1186 = scalar_lea.sflag [#allocation19], 1
    %1187 = vsyncpa %s1186, 1

</llo_original>
